<compile_context>
chip_gen: v7x
topology: tpu7x:2x2x1
jax: 0.10.0
libtpu: 0.0.40
codegen_flags: <defaults>
</compile_context>

<pallas_src>
import functools
import math

import jax
import jax.numpy as jnp
from jax.experimental import pallas as pl
from jax.experimental.pallas import tpu as pltpu  # noqa: F401  (TPU backend)

CDT = jnp.bfloat16   # MXU operand dtype (accumulation stays float32)


# ---------------------------------------------------------------------------
# Pallas kernels (3 fused kernels cover the whole eval forward pass)
# ---------------------------------------------------------------------------

def _protein_gcn_kernel(a_ref, dc_ref, dr_ref, x_ref,
                        w1_ref, b1_ref, w2_ref, b2_ref,
                        w3_ref, b3_ref, w4_ref, b4_ref, w1p_ref,
                        emb_ref, hp_ref):
    """4 GCNConv layers fused; A+I arrives in bf16, D^-1/2 scaling fused here so the
    normalized adjacency is built once in VMEM and reused across all layers.
    Also emits hp = protein_emb @ W1p (protein half of gib.cluster1)."""
    a = dc_ref[...] * a_ref[...] * dr_ref[...]            # bf16 [Np,Np], VMEM-resident
    h = x_ref[...]                                        # bf16 input features
    layers = ((w1_ref, b1_ref, True), (w2_ref, b2_ref, True),
              (w3_ref, b3_ref, True), (w4_ref, b4_ref, False))
    for w_ref, b_ref, relu in layers:
        xw = jnp.dot(h.astype(CDT), w_ref[...], preferred_element_type=jnp.float32)
        h = jnp.dot(a, xw.astype(CDT), preferred_element_type=jnp.float32) + b_ref[...]
        if relu:
            h = jnp.maximum(h, 0.0)       # eval mode: dropout == identity
    emb_ref[...] = h.astype(CDT)          # only ever an MXU operand downstream
    hp_ref[...] = jnp.dot(h.astype(CDT), w1p_ref[...],
                          preferred_element_type=jnp.float32)


def protein_gcn_stack(a_hat, dinv_c, dinv_r, x, layers, w1p):
    (w1, b1), (w2, b2), (w3, b3), (w4, b4) = layers
    n = x.shape[0]
    return pl.pallas_call(
        _protein_gcn_kernel,
        out_shape=(jax.ShapeDtypeStruct((n, w4.shape[1]), CDT),          # protein_emb
                   jax.ShapeDtypeStruct((n, w1p.shape[1]), jnp.float32)),  # hp
    )(a_hat, dinv_c, dinv_r, x.astype(CDT),
      w1.astype(CDT), b1.reshape(1, -1), w2.astype(CDT), b2.reshape(1, -1),
      w3.astype(CDT), b3.reshape(1, -1), w4.astype(CDT), b4.reshape(1, -1),
      w1p.astype(CDT))


def _molecule_gcn_kernel(a_ref, dc_ref, dr_ref, x_ref, pool_ref,
                         w1_ref, b1_ref, w2_ref, b2_ref, w3_ref, b3_ref,
                         w1m_ref, mol_ref, hm_ref):
    """3 GCNConv layers + global mean pool + molecule half of gib.cluster1, fused."""
    a = dc_ref[...] * a_ref[...] * dr_ref[...]            # bf16 normalized adjacency
    h = x_ref[...]
    layers = ((w1_ref, b1_ref, True), (w2_ref, b2_ref, True), (w3_ref, b3_ref, False))
    for w_ref, b_ref, relu in layers:
        xw = jnp.dot(h.astype(CDT), w_ref[...], preferred_element_type=jnp.float32)
        h = jnp.dot(a, xw.astype(CDT), preferred_element_type=jnp.float32) + b_ref[...]
        if relu:
            h = jnp.maximum(h, 0.0)
    mol = jnp.dot(pool_ref[...], h.astype(CDT),
                  preferred_element_type=jnp.float32)                 # [G, hidden]
    mol_ref[...] = mol
    hm_ref[...] = jnp.dot(mol.astype(CDT), w1m_ref[...],
                          preferred_element_type=jnp.float32)         # [G, D3]


def molecule_gcn_pool(a_hat, dinv_c, dinv_r, x, pool, layers, w1m):
    (w1, b1), (w2, b2), (w3, b3) = layers
    g = pool.shape[0]
    return pl.pallas_call(
        _molecule_gcn_kernel,
        out_shape=(jax.ShapeDtypeStruct((g, w3.shape[1]), jnp.float32),   # molecule_embedding
                   jax.ShapeDtypeStruct((g, w1m.shape[1]), jnp.float32)),  # hm
    )(a_hat, dinv_c, dinv_r, x.astype(CDT), pool.astype(CDT),
      w1.astype(CDT), b1.reshape(1, -1), w2.astype(CDT), b2.reshape(1, -1),
      w3.astype(CDT), b3.reshape(1, -1), w1m.astype(CDT))


def _assign_head_kernel(hp_ref, hm_ref, pe_ref, mol_ref,
                        b1_ref, w2d_ref, b2d_ref,
                        gw1_ref, gb1_ref, gw2_ref, gb2_ref,
                        fw1_ref, fb1_ref, fw2_ref, fb2_ref,
                        mw1a_ref, mw1b_ref, mb1_ref, mw2_ref, mb2_ref, mw3_ref, mb3_ref,
                        s0_ref, pred_ref, *, inv_np):
    """GIBGCN assignment (softmax over 2 clusters) + aggregate's pos_embedding + the
    full output head (gib.fc1->fc2, model.fc1->fc2, concat-free cat_MLP), all fused.
    Eval-dead outputs (graph_embedding, S^T A S penalty) are not computed."""
    # cluster1(cat(emb, mol)) = emb@W1p + mol@W1m + b1 ; ReLU   (hp / hm precomputed)
    h = jnp.maximum(hp_ref[...][None, :, :] + hm_ref[...] + b1_ref[...], 0.0)  # [G,Np,D3]
    # softmax over the 2 cluster logits -> column 0 = sigmoid(logit0 - logit1)
    dl = jnp.sum(h * w2d_ref[...], axis=-1) + b2d_ref[...]                     # [G, Np]
    s0 = 1.0 / (1.0 + jnp.exp(-dl))
    s0_ref[...] = s0
    # pos_embedding[g] = mean_n s0[g,n] * protein_emb[n] = (s0 @ protein_emb) / Np
    pos = jnp.dot(s0.astype(CDT), pe_ref[...],
                  preferred_element_type=jnp.float32) * inv_np                 # [G, D3]
    # gib.fc1 -> relu -> gib.fc2
    out = jnp.maximum(jnp.dot(pos.astype(CDT), gw1_ref[...],
                              preferred_element_type=jnp.float32) + gb1_ref[...], 0.0)
    out = jnp.dot(out.astype(CDT), gw2_ref[...],
                  preferred_element_type=jnp.float32) + gb2_ref[...]
    # model.fc1 -> relu -> model.fc2 on molecule_embedding
    mge = jnp.maximum(jnp.dot(mol_ref[...].astype(CDT), fw1_ref[...],
                              preferred_element_type=jnp.float32) + fb1_ref[...], 0.0)
    mge = jnp.dot(mge.astype(CDT), fw2_ref[...],
                  preferred_element_type=jnp.float32) + fb2_ref[...]
    # cat_MLP (concat avoided by splitting lin1 weights)
    h1 = jnp.maximum(jnp.dot(out.astype(CDT), mw1a_ref[...],
                             preferred_element_type=jnp.float32)
                     + jnp.dot(mge.astype(CDT), mw1b_ref[...],
                               preferred_element_type=jnp.float32)
                     + mb1_ref[...], 0.0)
    h2 = jnp.maximum(jnp.dot(h1.astype(CDT), mw2_ref[...],
                             preferred_element_type=jnp.float32) + mb2_ref[...], 0.0)
    pred_ref[...] = jnp.dot(h2.astype(CDT), mw3_ref[...],
                            preferred_element_type=jnp.float32) + mb3_ref[...]


def assign_head(hp, hm, protein_emb, molecule_embedding, gib, fc1, fc2, cat_mlp):
    n_p, d3 = hp.shape
    g = hm.shape[0]
    hidden = gib['fc2']['w'].shape[1]
    w2, b2 = gib['cluster2']['w'], gib['cluster2']['b']
    w2d = (w2[:, 0] - w2[:, 1]).reshape(1, 1, d3)           # logit0 - logit1 weights
    b2d = (b2[0] - b2[1]).reshape(1, 1)
    w1a = cat_mlp['w1'][:hidden]                            # multiplies `out`
    w1b = cat_mlp['w1'][hidden:]                            # multiplies molecule_graph_embedding
    s0, pred = pl.pallas_call(
        functools.partial(_assign_head_kernel, inv_np=1.0 / n_p),
        out_shape=(jax.ShapeDtypeStruct((g, n_p), jnp.float32),
                   jax.ShapeDtypeStruct((g, 1), jnp.float32)),
    )(hp, hm.reshape(g, 1, d3), protein_emb, molecule_embedding,
      gib['cluster1']['b'].reshape(1, 1, d3), w2d, b2d,
      gib['fc1']['w'].astype(CDT), gib['fc1']['b'].reshape(1, -1),
      gib['fc2']['w'].astype(CDT), gib['fc2']['b'].reshape(1, -1),
      fc1['w'].astype(CDT), fc1['b'].reshape(1, -1),
      fc2['w'].astype(CDT), fc2['b'].reshape(1, -1),
      w1a.astype(CDT), w1b.astype(CDT), cat_mlp['b1'].reshape(1, -1),
      cat_mlp['w2'].astype(CDT), cat_mlp['b2'].reshape(1, -1),
      cat_mlp['w3'].astype(CDT), cat_mlp['b3'].reshape(1, -1))
    return s0, pred


# ---------------------------------------------------------------------------
# Glue: graph-structure preprocessing & parameter init (plain JAX)
# ---------------------------------------------------------------------------

def gcn_adj_parts(edge_index, num_nodes):
    """A_hat = A + I (add_self_loops=True) in bf16, plus D^-1/2 (computed in f32,
    shipped in bf16 as column / row vectors).  Symmetric normalization is fused
    inside the GCN kernels to avoid extra dense O(N^2) XLA passes."""
    src, dst = edge_index[0], edge_index[1]
    a = jnp.zeros((num_nodes, num_nodes), jnp.float32).at[dst, src].add(1.0)
    a = a + jnp.eye(num_nodes, dtype=jnp.float32)
    deg = jnp.sum(a, axis=1)
    dinv = jnp.where(deg > 0, 1.0 / jnp.sqrt(deg), 0.0)
    return (a.astype(CDT),
            dinv.reshape(num_nodes, 1).astype(CDT),
            dinv.reshape(1, num_nodes).astype(CDT))


def _torch_linear_init(key, fan_in, fan_out):
    kw, kb = jax.random.split(key)
    bound = 1.0 / math.sqrt(fan_in)
    return {
        'w': jax.random.uniform(kw, (fan_in, fan_out), jnp.float32, -bound, bound),
        'b': jax.random.uniform(kb, (fan_out,), jnp.float32, -bound, bound),
    }


def _gcn_layer_init(key, fan_in, fan_out):
    bound = math.sqrt(6.0 / (fan_in + fan_out))
    w = jax.random.uniform(key, (fan_in, fan_out), jnp.float32, -bound, bound)
    b = jnp.zeros((fan_out,), jnp.float32)
    return (w, b)


def init_params(key, protein_dim1, protein_dim2, protein_dim3,
                molecule_dim1, molecule_dim2, hidden_dim, hidden_dim2):
    keys = jax.random.split(key, 20)
    params = {}
    emb = 0.02 * jax.random.normal(keys[0], (512 * 9 + 1, molecule_dim1), jnp.float32)
    params['atomencoder'] = emb.at[0].set(0.0)          # padding_idx = 0
    params['protein_gcn'] = [
        _gcn_layer_init(keys[1], protein_dim1, protein_dim2),
        _gcn_layer_init(keys[2], protein_dim2, protein_dim2),
        _gcn_layer_init(keys[3], protein_dim2, protein_dim2),
        _gcn_layer_init(keys[4], protein_dim2, protein_dim3),
    ]
    params['molecule_gcn'] = [
        _gcn_layer_init(keys[5], molecule_dim1, molecule_dim2),
        _gcn_layer_init(keys[6], molecule_dim2, molecule_dim2),
        _gcn_layer_init(keys[7], molecule_dim2, hidden_dim),
    ]
    params['gib'] = {
        'cluster1': _torch_linear_init(keys[8], protein_dim3 + hidden_dim, protein_dim3),
        'cluster2': _torch_linear_init(keys[9], protein_dim3, 2),
        'fc1': _torch_linear_init(keys[10], protein_dim3, protein_dim3),
        'fc2': _torch_linear_init(keys[11], protein_dim3, hidden_dim),
    }
    l1 = _torch_linear_init(keys[12], 2 * hidden_dim, hidden_dim2)
    l2 = _torch_linear_init(keys[13], hidden_dim2, hidden_dim2)
    l3 = _torch_linear_init(keys[14], hidden_dim2, 1)
    params['cat_mlp'] = {'w1': l1['w'], 'b1': l1['b'],
                         'w2': l2['w'], 'b2': l2['b'],
                         'w3': l3['w'], 'b3': l3['b']}
    params['fc1'] = _torch_linear_init(keys[15], protein_dim3, protein_dim3)
    params['fc2'] = _torch_linear_init(keys[16], protein_dim3, hidden_dim)
    # Discriminator params exist in the module but are only used in the train-mode MI loss.
    params['discriminator'] = {
        'lin1': _torch_linear_init(keys[17], 2 * protein_dim3, protein_dim3),
        'lin2': _torch_linear_init(keys[18], protein_dim3, 1),
    }
    return params


# ---------------------------------------------------------------------------
# forwardmodel.forward (eval branch)
# ---------------------------------------------------------------------------

def forward_model(params, protein_node_feat, protein_edge_index,
                  node_feat, edge_index, edge_attr, batch, num_graphs):
    del edge_attr  # unused by the reference forward pass (GCNConv ignores it)

    gib = params['gib']
    d3 = gib['cluster1']['w'].shape[1]
    hidden = params['molecule_gcn'][-1][0].shape[1]
    # model.fc1 (Linear(protein_dim3, protein_dim3)) is applied to molecule_embedding
    # ([G, hidden_dim]) in the reference, so the architecture requires hidden_dim == protein_dim3.
    assert params['fc1']['w'].shape[0] == hidden == d3, \
        "forwardmodel requires hidden_dim == protein_dim3 (model.fc1 consumes molecule_embedding)"

    # molecule atom encoder: embedding gather + mean over the 9 atom-feature slots (glue)
    nf = jnp.take(params['atomencoder'], node_feat, axis=0)   # [Nm, 9, d1]
    nf = jnp.mean(nf, axis=-2)                                # [Nm, d1]

    # protein GCN stack + protein half of cluster1 (single fused kernel; eval -> dropout = id)
    n_p = protein_node_feat.shape[0]
    a_p, dinv_pc, dinv_pr = gcn_adj_parts(protein_edge_index, n_p)
    w1p = gib['cluster1']['w'][:d3]
    protein_emb, hp = protein_gcn_stack(a_p, dinv_pc, dinv_pr, protein_node_feat,
                                        params['protein_gcn'], w1p)   # bf16 [Np,D3], f32 [Np,D3]

    # molecule GCN stack + global mean pool + molecule half of cluster1 (single kernel)
    n_m = nf.shape[0]
    a_m, dinv_mc, dinv_mr = gcn_adj_parts(edge_index, n_m)
    batch0 = batch - batch[0]
    one_hot = (batch0[None, :] == jnp.arange(num_graphs)[:, None]).astype(jnp.float32)
    pool = one_hot / jnp.maximum(jnp.sum(one_hot, axis=1, keepdims=True), 1.0)
    w1m = gib['cluster1']['w'][d3:]
    molecule_embedding, hm = molecule_gcn_pool(a_m, dinv_mc, dinv_mr, nf, pool,
                                               params['molecule_gcn'], w1m)

    # GIBGCN assignment + aggregate (pos_embedding only) + full output head, one kernel
    s0, pred = assign_head(hp, hm, protein_emb, molecule_embedding,
                           gib, params['fc1'], params['fc2'], params['cat_mlp'])
    protein_assignment = jnp.stack([s0, 1.0 - s0], axis=-1)   # softmax over 2 -> s1 = 1 - s0

    # TODO(synk): mode='train' branch (discriminator 20-step inner loop via torch.autograd
    # + torch.randperm shuffling in MI_Est, plus the pos_penalty / graph_embedding terms)
    # has no clean Pallas equivalent; the eval branch (pred, assignment) is implemented.
    return pred, protein_assignment


_forward_model_jit = jax.jit(forward_model, static_argnums=(7,))


# ---------------------------------------------------------------------------
# Pure-f32 JAX reference of the eval forward (for tolerance checking)
# ---------------------------------------------------------------------------

def reference_forward(params, protein_node_feat, protein_edge_index,
                      node_feat, edge_index, batch, num_graphs):
    def norm_adj(ei, n):
        a = jnp.zeros((n, n), jnp.float32).at[ei[1], ei[0]].add(1.0) + jnp.eye(n)
        d = jnp.sum(a, axis=1)
        di = jnp.where(d > 0, 1.0 / jnp.sqrt(d), 0.0)
        return di[:, None] * a * di[None, :]

    def gcn(a, x, layers):
        h = x
        for i, (w, b) in enumerate(layers):
            h = a @ (h @ w) + b
            if i < len(layers) - 1:
                h = jnp.maximum(h, 0.0)
        return h

    nf = jnp.mean(jnp.take(params['atomencoder'], node_feat, axis=0), axis=-2)
    emb = gcn(norm_adj(protein_edge_index, protein_node_feat.shape[0]),
              protein_node_feat, params['protein_gcn'])
    hmol = gcn(norm_adj(edge_index, nf.shape[0]), nf, params['molecule_gcn'])
    b0 = batch - batch[0]
    oh = (b0[None, :] == jnp.arange(num_graphs)[:, None]).astype(jnp.float32)
    mol = (oh / jnp.maximum(oh.sum(1, keepdims=True), 1.0)) @ hmol

    gib = params['gib']
    g, n_p, d3 = num_graphs, emb.shape[0], emb.shape[1]
    emb_b = jnp.broadcast_to(emb[None], (g, n_p, d3))
    mol_b = jnp.broadcast_to(mol[:, None, :], (g, n_p, mol.shape[1]))
    cat = jnp.concatenate([emb_b, mol_b], axis=-1)
    h = jnp.maximum(cat @ gib['cluster1']['w'] + gib['cluster1']['b'], 0.0)
    assignment = jax.nn.softmax(h @ gib['cluster2']['w'] + gib['cluster2']['b'], axis=-1)
    pos = jnp.mean(assignment[..., 0:1] * emb_b, axis=1)
    out = jnp.maximum(pos @ gib['fc1']['w'] + gib['fc1']['b'], 0.0)
    out = out @ gib['fc2']['w'] + gib['fc2']['b']
    mge = jnp.maximum(mol @ params['fc1']['w'] + params['fc1']['b'], 0.0)
    mge = mge @ params['fc2']['w'] + params['fc2']['b']
    cm = params['cat_mlp']
    x = jnp.maximum(jnp.concatenate([out, mge], axis=1) @ cm['w1'] + cm['b1'], 0.0)
    x = jnp.maximum(x @ cm['w2'] + cm['b2'], 0.0)
    pred = x @ cm['w3'] + cm['b3']
    return pred, assignment


# ---------------------------------------------------------------------------
# Driver
# ---------------------------------------------------------------------------

if __name__ == "__main__":
    protein_dim1, protein_dim2, protein_dim3 = 16, 32, 32
    molecule_dim1, molecule_dim2 = 16, 32
    hidden_dim, hidden_dim2 = 32, 32   # hidden_dim == protein_dim3 required (fc1 reuse)

    n_protein = 24          # protein nodes
    num_graphs = 2          # molecule graphs in the batch
    nodes_per_mol = 6
    n_mol = num_graphs * nodes_per_mol

    key = jax.random.PRNGKey(0)
    k_params, k_pfeat, k_nfeat = jax.random.split(key, 3)

    params = init_params(k_params, protein_dim1, protein_dim2, protein_dim3,
                         molecule_dim1, molecule_dim2, hidden_dim, hidden_dim2)

    # protein graph: undirected ring over 24 nodes
    src = jnp.arange(n_protein, dtype=jnp.int32)
    dst = (src + 1) % n_protein
    protein_edge_index = jnp.stack([jnp.concatenate([src, dst]),
                                    jnp.concatenate([dst, src])])

    # molecule graphs: per-graph undirected chains
    e_src, e_dst = [], []
    for g in range(num_graphs):
        base = g * nodes_per_mol
        for i in range(nodes_per_mol - 1):
            e_src += [base + i, base + i + 1]
            e_dst += [base + i + 1, base + i]
    edge_index = jnp.array([e_src, e_dst], dtype=jnp.int32)
    edge_attr = jnp.zeros((len(e_src), 3), jnp.float32)
    batch = jnp.repeat(jnp.arange(num_graphs, dtype=jnp.int32), nodes_per_mol)

    protein_node_feat = jax.random.normal(k_pfeat, (n_protein, protein_dim1), jnp.float32)
    node_feat = jax.random.randint(k_nfeat, (n_mol, 9), 0, 512 * 9 + 1, dtype=jnp.int32)

    pred, protein_assignment = _forward_model_jit(
        params, protein_node_feat, protein_edge_index,
        node_feat, edge_index, edge_attr, batch, num_graphs)
    jax.block_until_ready((pred, protein_assignment))

    assert pred.shape == (num_graphs, 1)
    assert protein_assignment.shape == (num_graphs, n_protein, 2)
    assert bool(jnp.all(jnp.isfinite(pred)))
    assert bool(jnp.all(jnp.isfinite(protein_assignment)))

    # pure-f32 reference check (bf16 MXU operands -> loose tolerance)
    pred_ref, assign_ref = reference_forward(params, protein_node_feat, protein_edge_index,
                                             node_feat, edge_index, batch, num_graphs)
    assert bool(jnp.allclose(pred, pred_ref, rtol=5e-2, atol=5e-2)), \
        (pred, pred_ref)
    assert bool(jnp.allclose(protein_assignment, assign_ref, rtol=5e-2, atol=5e-2)), \
        "assignment mismatch vs f32 reference"

    print("KERNEL_OK")
</pallas_src>

<mosaic_0001>
module attributes {stable_mosaic.version = 11 : i64} {
  func.func private @main(%arg0: i32) attributes {dimension_semantics = [#tpu.dimension_semantics<core_parallel>], iteration_bounds = array<i64: 2>, tpu.core_type = #tpu.core_type<sc_scalar_subcore>, window_params = []} {
    return
  }
}

module attributes {stable_mosaic.version = 11 : i64} {
  func.func private @main(%arg0: i32) attributes {dimension_semantics = [#tpu.dimension_semantics<core_parallel>], iteration_bounds = array<i64: 2>, tpu.core_type = #tpu.core_type<sc_scalar_subcore>, window_params = []} {
    return
  }
}

module attributes {stable_mosaic.version = 11 : i64} {
  func.func @_molecule_gcn_kernel(%arg0: memref<12x12xbf16, #tpu.memory_space<vmem>>, %arg1: memref<12x1xbf16, #tpu.memory_space<vmem>>, %arg2: memref<1x12xbf16, #tpu.memory_space<vmem>>, %arg3: memref<12x16xbf16, #tpu.memory_space<vmem>>, %arg4: memref<2x12xbf16, #tpu.memory_space<vmem>>, %arg5: memref<16x32xbf16, #tpu.memory_space<vmem>>, %arg6: memref<1x32xf32, #tpu.memory_space<vmem>>, %arg7: memref<32x32xbf16, #tpu.memory_space<vmem>>, %arg8: memref<1x32xf32, #tpu.memory_space<vmem>>, %arg9: memref<32x32xbf16, #tpu.memory_space<vmem>>, %arg10: memref<1x32xf32, #tpu.memory_space<vmem>>, %arg11: memref<32x32xbf16, #tpu.memory_space<vmem>>, %arg12: memref<2x32xf32, #tpu.memory_space<vmem>>, %arg13: memref<2x32xf32, #tpu.memory_space<vmem>>) attributes {dimension_semantics = [], scalar_prefetch = 0 : i64, scratch_operands = 0 : i64, tpu.core_type = #tpu.core_type<tc>} {
    %c0 = arith.constant 0 : index
    %c0_0 = arith.constant 0 : index
    %0 = vector.load %arg1[%c0, %c0_0] : memref<12x1xbf16, #tpu.memory_space<vmem>>, vector<12x1xbf16>
    %c0_1 = arith.constant 0 : index
    %c0_2 = arith.constant 0 : index
    %1 = vector.load %arg0[%c0_1, %c0_2] : memref<12x12xbf16, #tpu.memory_space<vmem>>, vector<12x12xbf16>
    %2 = vector.broadcast %0 : vector<12x1xbf16> to vector<12x12xbf16>
    %3 = arith.mulf %2, %1 : vector<12x12xbf16>
    %c0_3 = arith.constant 0 : index
    %c0_4 = arith.constant 0 : index
    %4 = vector.load %arg2[%c0_3, %c0_4] : memref<1x12xbf16, #tpu.memory_space<vmem>>, vector<1x12xbf16>
    %5 = vector.broadcast %4 : vector<1x12xbf16> to vector<12x12xbf16>
    %6 = arith.mulf %3, %5 : vector<12x12xbf16>
    %c0_5 = arith.constant 0 : index
    %c0_6 = arith.constant 0 : index
    %7 = vector.load %arg3[%c0_5, %c0_6] : memref<12x16xbf16, #tpu.memory_space<vmem>>, vector<12x16xbf16>
    %c0_7 = arith.constant 0 : index
    %c0_8 = arith.constant 0 : index
    %8 = vector.load %arg5[%c0_7, %c0_8] : memref<16x32xbf16, #tpu.memory_space<vmem>>, vector<16x32xbf16>
    %cst = arith.constant dense<0.000000e+00> : vector<12x32xf32>
    %9 = tpu.matmul %7, %8, %cst {dimension_numbers = #tpu.dot_dimension_numbers<[1], [0], [0], [1], [0, 0, 1, 1], [], []>} : vector<12x16xbf16>, vector<16x32xbf16>, vector<12x32xf32> -> vector<12x32xf32>
    %10 = arith.truncf %9 : vector<12x32xf32> to vector<12x32xbf16>
    %cst_9 = arith.constant dense<0.000000e+00> : vector<12x32xf32>
    %11 = tpu.matmul %6, %10, %cst_9 {dimension_numbers = #tpu.dot_dimension_numbers<[1], [0], [0], [1], [0, 0, 1, 1], [], []>} : vector<12x12xbf16>, vector<12x32xbf16>, vector<12x32xf32> -> vector<12x32xf32>
    %c0_10 = arith.constant 0 : index
    %c0_11 = arith.constant 0 : index
    %12 = vector.load %arg6[%c0_10, %c0_11] : memref<1x32xf32, #tpu.memory_space<vmem>>, vector<1x32xf32>
    %13 = vector.broadcast %12 : vector<1x32xf32> to vector<12x32xf32>
    %14 = arith.addf %11, %13 : vector<12x32xf32>
    %cst_12 = arith.constant 0.000000e+00 : f32
    %15 = vector.broadcast %cst_12 : f32 to vector<12x32xf32>
    %16 = arith.maximumf %14, %15 : vector<12x32xf32>
    %17 = arith.truncf %16 : vector<12x32xf32> to vector<12x32xbf16>
    %c0_13 = arith.constant 0 : index
    %c0_14 = arith.constant 0 : index
    %18 = vector.load %arg7[%c0_13, %c0_14] : memref<32x32xbf16, #tpu.memory_space<vmem>>, vector<32x32xbf16>
    %cst_15 = arith.constant dense<0.000000e+00> : vector<12x32xf32>
    %19 = tpu.matmul %17, %18, %cst_15 {dimension_numbers = #tpu.dot_dimension_numbers<[1], [0], [0], [1], [0, 0, 1, 1], [], []>} : vector<12x32xbf16>, vector<32x32xbf16>, vector<12x32xf32> -> vector<12x32xf32>
    %20 = arith.truncf %19 : vector<12x32xf32> to vector<12x32xbf16>
    %cst_16 = arith.constant dense<0.000000e+00> : vector<12x32xf32>
    %21 = tpu.matmul %6, %20, %cst_16 {dimension_numbers = #tpu.dot_dimension_numbers<[1], [0], [0], [1], [0, 0, 1, 1], [], []>} : vector<12x12xbf16>, vector<12x32xbf16>, vector<12x32xf32> -> vector<12x32xf32>
    %c0_17 = arith.constant 0 : index
    %c0_18 = arith.constant 0 : index
    %22 = vector.load %arg8[%c0_17, %c0_18] : memref<1x32xf32, #tpu.memory_space<vmem>>, vector<1x32xf32>
    %23 = vector.broadcast %22 : vector<1x32xf32> to vector<12x32xf32>
    %24 = arith.addf %21, %23 : vector<12x32xf32>
    %cst_19 = arith.constant 0.000000e+00 : f32
    %25 = vector.broadcast %cst_19 : f32 to vector<12x32xf32>
    %26 = arith.maximumf %24, %25 : vector<12x32xf32>
    %27 = arith.truncf %26 : vector<12x32xf32> to vector<12x32xbf16>
    %c0_20 = arith.constant 0 : index
    %c0_21 = arith.constant 0 : index
    %28 = vector.load %arg9[%c0_20, %c0_21] : memref<32x32xbf16, #tpu.memory_space<vmem>>, vector<32x32xbf16>
    %cst_22 = arith.constant dense<0.000000e+00> : vector<12x32xf32>
    %29 = tpu.matmul %27, %28, %cst_22 {dimension_numbers = #tpu.dot_dimension_numbers<[1], [0], [0], [1], [0, 0, 1, 1], [], []>} : vector<12x32xbf16>, vector<32x32xbf16>, vector<12x32xf32> -> vector<12x32xf32>
    %30 = arith.truncf %29 : vector<12x32xf32> to vector<12x32xbf16>
    %cst_23 = arith.constant dense<0.000000e+00> : vector<12x32xf32>
    %31 = tpu.matmul %6, %30, %cst_23 {dimension_numbers = #tpu.dot_dimension_numbers<[1], [0], [0], [1], [0, 0, 1, 1], [], []>} : vector<12x12xbf16>, vector<12x32xbf16>, vector<12x32xf32> -> vector<12x32xf32>
    %c0_24 = arith.constant 0 : index
    %c0_25 = arith.constant 0 : index
    %32 = vector.load %arg10[%c0_24, %c0_25] : memref<1x32xf32, #tpu.memory_space<vmem>>, vector<1x32xf32>
    %33 = vector.broadcast %32 : vector<1x32xf32> to vector<12x32xf32>
    %34 = arith.addf %31, %33 : vector<12x32xf32>
    %c0_26 = arith.constant 0 : index
    %c0_27 = arith.constant 0 : index
    %35 = vector.load %arg4[%c0_26, %c0_27] : memref<2x12xbf16, #tpu.memory_space<vmem>>, vector<2x12xbf16>
    %36 = arith.truncf %34 : vector<12x32xf32> to vector<12x32xbf16>
    %cst_28 = arith.constant dense<0.000000e+00> : vector<2x32xf32>
    %37 = tpu.matmul %35, %36, %cst_28 {dimension_numbers = #tpu.dot_dimension_numbers<[1], [0], [0], [1], [0, 0, 1, 1], [], []>} : vector<2x12xbf16>, vector<12x32xbf16>, vector<2x32xf32> -> vector<2x32xf32>
    %c0_29 = arith.constant 0 : index
    %c0_30 = arith.constant 0 : index
    %38 = vector.load %arg12[%c0_29, %c0_30] : memref<2x32xf32, #tpu.memory_space<vmem>>, vector<2x32xf32>
    tpu.vector_store %arg12[%c0_29, %c0_30], %37 {strides = array<i32>} : memref<2x32xf32, #tpu.memory_space<vmem>>, vector<2x32xf32>,
    %39 = arith.truncf %37 : vector<2x32xf32> to vector<2x32xbf16>
    %c0_31 = arith.constant 0 : index
    %c0_32 = arith.constant 0 : index
    %40 = vector.load %arg11[%c0_31, %c0_32] : memref<32x32xbf16, #tpu.memory_space<vmem>>, vector<32x32xbf16>
    %cst_33 = arith.constant dense<0.000000e+00> : vector<2x32xf32>
    %41 = tpu.matmul %39, %40, %cst_33 {dimension_numbers = #tpu.dot_dimension_numbers<[1], [0], [0], [1], [0, 0, 1, 1], [], []>} : vector<2x32xbf16>, vector<32x32xbf16>, vector<2x32xf32> -> vector<2x32xf32>
    %c0_34 = arith.constant 0 : index
    %c0_35 = arith.constant 0 : index
    %42 = vector.load %arg13[%c0_34, %c0_35] : memref<2x32xf32, #tpu.memory_space<vmem>>, vector<2x32xf32>
    tpu.vector_store %arg13[%c0_34, %c0_35], %41 {strides = array<i32>} : memref<2x32xf32, #tpu.memory_space<vmem>>, vector<2x32xf32>,
    return
  }
}

module attributes {stable_mosaic.version = 11 : i64} {
  func.func @_protein_gcn_kernel(%arg0: memref<24x24xbf16, #tpu.memory_space<vmem>>, %arg1: memref<24x1xbf16, #tpu.memory_space<vmem>>, %arg2: memref<1x24xbf16, #tpu.memory_space<vmem>>, %arg3: memref<24x16xbf16, #tpu.memory_space<vmem>>, %arg4: memref<16x32xbf16, #tpu.memory_space<vmem>>, %arg5: memref<1x32xf32, #tpu.memory_space<vmem>>, %arg6: memref<32x32xbf16, #tpu.memory_space<vmem>>, %arg7: memref<1x32xf32, #tpu.memory_space<vmem>>, %arg8: memref<32x32xbf16, #tpu.memory_space<vmem>>, %arg9: memref<1x32xf32, #tpu.memory_space<vmem>>, %arg10: memref<32x32xbf16, #tpu.memory_space<vmem>>, %arg11: memref<1x32xf32, #tpu.memory_space<vmem>>, %arg12: memref<32x32xbf16, #tpu.memory_space<vmem>>, %arg13: memref<24x32xbf16, #tpu.memory_space<vmem>>, %arg14: memref<24x32xf32, #tpu.memory_space<vmem>>) attributes {dimension_semantics = [], scalar_prefetch = 0 : i64, scratch_operands = 0 : i64, tpu.core_type = #tpu.core_type<tc>} {
    %c0 = arith.constant 0 : index
    %c0_0 = arith.constant 0 : index
    %0 = vector.load %arg1[%c0, %c0_0] : memref<24x1xbf16, #tpu.memory_space<vmem>>, vector<24x1xbf16>
    %c0_1 = arith.constant 0 : index
    %c0_2 = arith.constant 0 : index
    %1 = vector.load %arg0[%c0_1, %c0_2] : memref<24x24xbf16, #tpu.memory_space<vmem>>, vector<24x24xbf16>
    %2 = vector.broadcast %0 : vector<24x1xbf16> to vector<24x24xbf16>
    %3 = arith.mulf %2, %1 : vector<24x24xbf16>
    %c0_3 = arith.constant 0 : index
    %c0_4 = arith.constant 0 : index
    %4 = vector.load %arg2[%c0_3, %c0_4] : memref<1x24xbf16, #tpu.memory_space<vmem>>, vector<1x24xbf16>
    %5 = vector.broadcast %4 : vector<1x24xbf16> to vector<24x24xbf16>
    %6 = arith.mulf %3, %5 : vector<24x24xbf16>
    %c0_5 = arith.constant 0 : index
    %c0_6 = arith.constant 0 : index
    %7 = vector.load %arg3[%c0_5, %c0_6] : memref<24x16xbf16, #tpu.memory_space<vmem>>, vector<24x16xbf16>
    %c0_7 = arith.constant 0 : index
    %c0_8 = arith.constant 0 : index
    %8 = vector.load %arg4[%c0_7, %c0_8] : memref<16x32xbf16, #tpu.memory_space<vmem>>, vector<16x32xbf16>
    %cst = arith.constant dense<0.000000e+00> : vector<24x32xf32>
    %9 = tpu.matmul %7, %8, %cst {dimension_numbers = #tpu.dot_dimension_numbers<[1], [0], [0], [1], [0, 0, 1, 1], [], []>} : vector<24x16xbf16>, vector<16x32xbf16>, vector<24x32xf32> -> vector<24x32xf32>
    %10 = arith.truncf %9 : vector<24x32xf32> to vector<24x32xbf16>
    %cst_9 = arith.constant dense<0.000000e+00> : vector<24x32xf32>
    %11 = tpu.matmul %6, %10, %cst_9 {dimension_numbers = #tpu.dot_dimension_numbers<[1], [0], [0], [1], [0, 0, 1, 1], [], []>} : vector<24x24xbf16>, vector<24x32xbf16>, vector<24x32xf32> -> vector<24x32xf32>
    %c0_10 = arith.constant 0 : index
    %c0_11 = arith.constant 0 : index
    %12 = vector.load %arg5[%c0_10, %c0_11] : memref<1x32xf32, #tpu.memory_space<vmem>>, vector<1x32xf32>
    %13 = vector.broadcast %12 : vector<1x32xf32> to vector<24x32xf32>
    %14 = arith.addf %11, %13 : vector<24x32xf32>
    %cst_12 = arith.constant 0.000000e+00 : f32
    %15 = vector.broadcast %cst_12 : f32 to vector<24x32xf32>
    %16 = arith.maximumf %14, %15 : vector<24x32xf32>
    %17 = arith.truncf %16 : vector<24x32xf32> to vector<24x32xbf16>
    %c0_13 = arith.constant 0 : index
    %c0_14 = arith.constant 0 : index
    %18 = vector.load %arg6[%c0_13, %c0_14] : memref<32x32xbf16, #tpu.memory_space<vmem>>, vector<32x32xbf16>
    %cst_15 = arith.constant dense<0.000000e+00> : vector<24x32xf32>
    %19 = tpu.matmul %17, %18, %cst_15 {dimension_numbers = #tpu.dot_dimension_numbers<[1], [0], [0], [1], [0, 0, 1, 1], [], []>} : vector<24x32xbf16>, vector<32x32xbf16>, vector<24x32xf32> -> vector<24x32xf32>
    %20 = arith.truncf %19 : vector<24x32xf32> to vector<24x32xbf16>
    %cst_16 = arith.constant dense<0.000000e+00> : vector<24x32xf32>
    %21 = tpu.matmul %6, %20, %cst_16 {dimension_numbers = #tpu.dot_dimension_numbers<[1], [0], [0], [1], [0, 0, 1, 1], [], []>} : vector<24x24xbf16>, vector<24x32xbf16>, vector<24x32xf32> -> vector<24x32xf32>
    %c0_17 = arith.constant 0 : index
    %c0_18 = arith.constant 0 : index
    %22 = vector.load %arg7[%c0_17, %c0_18] : memref<1x32xf32, #tpu.memory_space<vmem>>, vector<1x32xf32>
    %23 = vector.broadcast %22 : vector<1x32xf32> to vector<24x32xf32>
    %24 = arith.addf %21, %23 : vector<24x32xf32>
    %cst_19 = arith.constant 0.000000e+00 : f32
    %25 = vector.broadcast %cst_19 : f32 to vector<24x32xf32>
    %26 = arith.maximumf %24, %25 : vector<24x32xf32>
    %27 = arith.truncf %26 : vector<24x32xf32> to vector<24x32xbf16>
    %c0_20 = arith.constant 0 : index
    %c0_21 = arith.constant 0 : index
    %28 = vector.load %arg8[%c0_20, %c0_21] : memref<32x32xbf16, #tpu.memory_space<vmem>>, vector<32x32xbf16>
    %cst_22 = arith.constant dense<0.000000e+00> : vector<24x32xf32>
    %29 = tpu.matmul %27, %28, %cst_22 {dimension_numbers = #tpu.dot_dimension_numbers<[1], [0], [0], [1], [0, 0, 1, 1], [], []>} : vector<24x32xbf16>, vector<32x32xbf16>, vector<24x32xf32> -> vector<24x32xf32>
    %30 = arith.truncf %29 : vector<24x32xf32> to vector<24x32xbf16>
    %cst_23 = arith.constant dense<0.000000e+00> : vector<24x32xf32>
    %31 = tpu.matmul %6, %30, %cst_23 {dimension_numbers = #tpu.dot_dimension_numbers<[1], [0], [0], [1], [0, 0, 1, 1], [], []>} : vector<24x24xbf16>, vector<24x32xbf16>, vector<24x32xf32> -> vector<24x32xf32>
    %c0_24 = arith.constant 0 : index
    %c0_25 = arith.constant 0 : index
    %32 = vector.load %arg9[%c0_24, %c0_25] : memref<1x32xf32, #tpu.memory_space<vmem>>, vector<1x32xf32>
    %33 = vector.broadcast %32 : vector<1x32xf32> to vector<24x32xf32>
    %34 = arith.addf %31, %33 : vector<24x32xf32>
    %cst_26 = arith.constant 0.000000e+00 : f32
    %35 = vector.broadcast %cst_26 : f32 to vector<24x32xf32>
    %36 = arith.maximumf %34, %35 : vector<24x32xf32>
    %37 = arith.truncf %36 : vector<24x32xf32> to vector<24x32xbf16>
    %c0_27 = arith.constant 0 : index
    %c0_28 = arith.constant 0 : index
    %38 = vector.load %arg10[%c0_27, %c0_28] : memref<32x32xbf16, #tpu.memory_space<vmem>>, vector<32x32xbf16>
    %cst_29 = arith.constant dense<0.000000e+00> : vector<24x32xf32>
    %39 = tpu.matmul %37, %38, %cst_29 {dimension_numbers = #tpu.dot_dimension_numbers<[1], [0], [0], [1], [0, 0, 1, 1], [], []>} : vector<24x32xbf16>, vector<32x32xbf16>, vector<24x32xf32> -> vector<24x32xf32>
    %40 = arith.truncf %39 : vector<24x32xf32> to vector<24x32xbf16>
    %cst_30 = arith.constant dense<0.000000e+00> : vector<24x32xf32>
    %41 = tpu.matmul %6, %40, %cst_30 {dimension_numbers = #tpu.dot_dimension_numbers<[1], [0], [0], [1], [0, 0, 1, 1], [], []>} : vector<24x24xbf16>, vector<24x32xbf16>, vector<24x32xf32> -> vector<24x32xf32>
    %c0_31 = arith.constant 0 : index
    %c0_32 = arith.constant 0 : index
    %42 = vector.load %arg11[%c0_31, %c0_32] : memref<1x32xf32, #tpu.memory_space<vmem>>, vector<1x32xf32>
    %43 = vector.broadcast %42 : vector<1x32xf32> to vector<24x32xf32>
    %44 = arith.addf %41, %43 : vector<24x32xf32>
    %45 = arith.truncf %44 : vector<24x32xf32> to vector<24x32xbf16>
    %c0_33 = arith.constant 0 : index
    %c0_34 = arith.constant 0 : index
    %46 = vector.load %arg13[%c0_33, %c0_34] : memref<24x32xbf16, #tpu.memory_space<vmem>>, vector<24x32xbf16>
    tpu.vector_store %arg13[%c0_33, %c0_34], %45 {strides = array<i32>} : memref<24x32xbf16, #tpu.memory_space<vmem>>, vector<24x32xbf16>,
    %47 = arith.truncf %44 : vector<24x32xf32> to vector<24x32xbf16>
    %c0_35 = arith.constant 0 : index
    %c0_36 = arith.constant 0 : index
    %48 = vector.load %arg12[%c0_35, %c0_36] : memref<32x32xbf16, #tpu.memory_space<vmem>>, vector<32x32xbf16>
    %cst_37 = arith.constant dense<0.000000e+00> : vector<24x32xf32>
    %49 = tpu.matmul %47, %48, %cst_37 {dimension_numbers = #tpu.dot_dimension_numbers<[1], [0], [0], [1], [0, 0, 1, 1], [], []>} : vector<24x32xbf16>, vector<32x32xbf16>, vector<24x32xf32> -> vector<24x32xf32>
    %c0_38 = arith.constant 0 : index
    %c0_39 = arith.constant 0 : index
    %50 = vector.load %arg14[%c0_38, %c0_39] : memref<24x32xf32, #tpu.memory_space<vmem>>, vector<24x32xf32>
    tpu.vector_store %arg14[%c0_38, %c0_39], %49 {strides = array<i32>} : memref<24x32xf32, #tpu.memory_space<vmem>>, vector<24x32xf32>,
    return
  }
}

module attributes {stable_mosaic.version = 11 : i64} {
  func.func @_assign_head_kernel(%arg0: memref<24x32xf32, #tpu.memory_space<vmem>>, %arg1: memref<2x1x32xf32, #tpu.memory_space<vmem>>, %arg2: memref<24x32xbf16, #tpu.memory_space<vmem>>, %arg3: memref<2x32xf32, #tpu.memory_space<vmem>>, %arg4: memref<1x1x32xf32, #tpu.memory_space<vmem>>, %arg5: memref<1x1x32xf32, #tpu.memory_space<vmem>>, %arg6: memref<1x1xf32, #tpu.memory_space<vmem>>, %arg7: memref<32x32xbf16, #tpu.memory_space<vmem>>, %arg8: memref<1x32xf32, #tpu.memory_space<vmem>>, %arg9: memref<32x32xbf16, #tpu.memory_space<vmem>>, %arg10: memref<1x32xf32, #tpu.memory_space<vmem>>, %arg11: memref<32x32xbf16, #tpu.memory_space<vmem>>, %arg12: memref<1x32xf32, #tpu.memory_space<vmem>>, %arg13: memref<32x32xbf16, #tpu.memory_space<vmem>>, %arg14: memref<1x32xf32, #tpu.memory_space<vmem>>, %arg15: memref<32x32xbf16, #tpu.memory_space<vmem>>, %arg16: memref<32x32xbf16, #tpu.memory_space<vmem>>, %arg17: memref<1x32xf32, #tpu.memory_space<vmem>>, %arg18: memref<32x32xbf16, #tpu.memory_space<vmem>>, %arg19: memref<1x32xf32, #tpu.memory_space<vmem>>, %arg20: memref<32x1xbf16, #tpu.memory_space<vmem>>, %arg21: memref<1x1xf32, #tpu.memory_space<vmem>>, %arg22: memref<2x24xf32, #tpu.memory_space<vmem>>, %arg23: memref<2x1xf32, #tpu.memory_space<vmem>>) attributes {dimension_semantics = [], scalar_prefetch = 0 : i64, scratch_operands = 0 : i64, tpu.core_type = #tpu.core_type<tc>} {
    %c0 = arith.constant 0 : index
    %c0_0 = arith.constant 0 : index
    %0 = vector.load %arg0[%c0, %c0_0] : memref<24x32xf32, #tpu.memory_space<vmem>>, vector<24x32xf32>
    %1 = vector.shape_cast %0 : vector<24x32xf32> to vector<1x24x32xf32>
    %c0_1 = arith.constant 0 : index
    %c0_2 = arith.constant 0 : index
    %c0_3 = arith.constant 0 : index
    %2 = vector.load %arg1[%c0_1, %c0_2, %c0_3] : memref<2x1x32xf32, #tpu.memory_space<vmem>>, vector<2x1x32xf32>
    %3 = vector.broadcast %1 : vector<1x24x32xf32> to vector<2x24x32xf32>
    %4 = vector.broadcast %2 : vector<2x1x32xf32> to vector<2x24x32xf32>
    %5 = arith.addf %3, %4 : vector<2x24x32xf32>
    %c0_4 = arith.constant 0 : index
    %c0_5 = arith.constant 0 : index
    %c0_6 = arith.constant 0 : index
    %6 = vector.load %arg4[%c0_4, %c0_5, %c0_6] : memref<1x1x32xf32, #tpu.memory_space<vmem>>, vector<1x1x32xf32>
    %7 = vector.broadcast %6 : vector<1x1x32xf32> to vector<2x24x32xf32>
    %8 = arith.addf %5, %7 : vector<2x24x32xf32>
    %cst = arith.constant 0.000000e+00 : f32
    %9 = vector.broadcast %cst : f32 to vector<2x24x32xf32>
    %10 = arith.maximumf %8, %9 : vector<2x24x32xf32>
    %c0_7 = arith.constant 0 : index
    %c0_8 = arith.constant 0 : index
    %c0_9 = arith.constant 0 : index
    %11 = vector.load %arg5[%c0_7, %c0_8, %c0_9] : memref<1x1x32xf32, #tpu.memory_space<vmem>>, vector<1x1x32xf32>
    %12 = vector.broadcast %11 : vector<1x1x32xf32> to vector<2x24x32xf32>
    %13 = arith.mulf %10, %12 : vector<2x24x32xf32>
    %cst_10 = arith.constant dense<0.000000e+00> : vector<2x24xf32>
    %14 = vector.multi_reduction <add>, %13, %cst_10 [2] : vector<2x24x32xf32> to vector<2x24xf32>
    %c0_11 = arith.constant 0 : index
    %c0_12 = arith.constant 0 : index
    %15 = vector.load %arg6[%c0_11, %c0_12] : memref<1x1xf32, #tpu.memory_space<vmem>>, vector<1x1xf32>
    %16 = vector.broadcast %15 : vector<1x1xf32> to vector<2x24xf32>
    %17 = arith.addf %14, %16 : vector<2x24xf32>
    %cst_13 = arith.constant 0.000000e+00 : f32
    %18 = vector.broadcast %cst_13 : f32 to vector<2x24xf32>
    %19 = arith.subf %18, %17 : vector<2x24xf32>
    %20 = math.exp %19 : vector<2x24xf32>
    %cst_14 = arith.constant 1.000000e+00 : f32
    %21 = vector.broadcast %cst_14 : f32 to vector<2x24xf32>
    %22 = arith.addf %21, %20 : vector<2x24xf32>
    %cst_15 = arith.constant 1.000000e+00 : f32
    %23 = vector.broadcast %cst_15 : f32 to vector<2x24xf32>
    %24 = arith.divf %23, %22 : vector<2x24xf32>
    %c0_16 = arith.constant 0 : index
    %c0_17 = arith.constant 0 : index
    %25 = vector.load %arg22[%c0_16, %c0_17] : memref<2x24xf32, #tpu.memory_space<vmem>>, vector<2x24xf32>
    tpu.vector_store %arg22[%c0_16, %c0_17], %24 {strides = array<i32>} : memref<2x24xf32, #tpu.memory_space<vmem>>, vector<2x24xf32>,
    %26 = arith.truncf %24 : vector<2x24xf32> to vector<2x24xbf16>
    %c0_18 = arith.constant 0 : index
    %c0_19 = arith.constant 0 : index
    %27 = vector.load %arg2[%c0_18, %c0_19] : memref<24x32xbf16, #tpu.memory_space<vmem>>, vector<24x32xbf16>
    %cst_20 = arith.constant dense<0.000000e+00> : vector<2x32xf32>
    %28 = tpu.matmul %26, %27, %cst_20 {dimension_numbers = #tpu.dot_dimension_numbers<[1], [0], [0], [1], [0, 0, 1, 1], [], []>} : vector<2x24xbf16>, vector<24x32xbf16>, vector<2x32xf32> -> vector<2x32xf32>
    %cst_21 = arith.constant 0.0416666679 : f32
    %29 = vector.broadcast %cst_21 : f32 to vector<2x32xf32>
    %30 = arith.mulf %28, %29 : vector<2x32xf32>
    %31 = arith.truncf %30 : vector<2x32xf32> to vector<2x32xbf16>
    %c0_22 = arith.constant 0 : index
    %c0_23 = arith.constant 0 : index
    %32 = vector.load %arg7[%c0_22, %c0_23] : memref<32x32xbf16, #tpu.memory_space<vmem>>, vector<32x32xbf16>
    %cst_24 = arith.constant dense<0.000000e+00> : vector<2x32xf32>
    %33 = tpu.matmul %31, %32, %cst_24 {dimension_numbers = #tpu.dot_dimension_numbers<[1], [0], [0], [1], [0, 0, 1, 1], [], []>} : vector<2x32xbf16>, vector<32x32xbf16>, vector<2x32xf32> -> vector<2x32xf32>
    %c0_25 = arith.constant 0 : index
    %c0_26 = arith.constant 0 : index
    %34 = vector.load %arg8[%c0_25, %c0_26] : memref<1x32xf32, #tpu.memory_space<vmem>>, vector<1x32xf32>
    %35 = vector.broadcast %34 : vector<1x32xf32> to vector<2x32xf32>
    %36 = arith.addf %33, %35 : vector<2x32xf32>
    %cst_27 = arith.constant 0.000000e+00 : f32
    %37 = vector.broadcast %cst_27 : f32 to vector<2x32xf32>
    %38 = arith.maximumf %36, %37 : vector<2x32xf32>
    %39 = arith.truncf %38 : vector<2x32xf32> to vector<2x32xbf16>
    %c0_28 = arith.constant 0 : index
    %c0_29 = arith.constant 0 : index
    %40 = vector.load %arg9[%c0_28, %c0_29] : memref<32x32xbf16, #tpu.memory_space<vmem>>, vector<32x32xbf16>
    %cst_30 = arith.constant dense<0.000000e+00> : vector<2x32xf32>
    %41 = tpu.matmul %39, %40, %cst_30 {dimension_numbers = #tpu.dot_dimension_numbers<[1], [0], [0], [1], [0, 0, 1, 1], [], []>} : vector<2x32xbf16>, vector<32x32xbf16>, vector<2x32xf32> -> vector<2x32xf32>
    %c0_31 = arith.constant 0 : index
    %c0_32 = arith.constant 0 : index
    %42 = vector.load %arg10[%c0_31, %c0_32] : memref<1x32xf32, #tpu.memory_space<vmem>>, vector<1x32xf32>
    %43 = vector.broadcast %42 : vector<1x32xf32> to vector<2x32xf32>
    %44 = arith.addf %41, %43 : vector<2x32xf32>
    %c0_33 = arith.constant 0 : index
    %c0_34 = arith.constant 0 : index
    %45 = vector.load %arg3[%c0_33, %c0_34] : memref<2x32xf32, #tpu.memory_space<vmem>>, vector<2x32xf32>
    %46 = arith.truncf %45 : vector<2x32xf32> to vector<2x32xbf16>
    %c0_35 = arith.constant 0 : index
    %c0_36 = arith.constant 0 : index
    %47 = vector.load %arg11[%c0_35, %c0_36] : memref<32x32xbf16, #tpu.memory_space<vmem>>, vector<32x32xbf16>
    %cst_37 = arith.constant dense<0.000000e+00> : vector<2x32xf32>
    %48 = tpu.matmul %46, %47, %cst_37 {dimension_numbers = #tpu.dot_dimension_numbers<[1], [0], [0], [1], [0, 0, 1, 1], [], []>} : vector<2x32xbf16>, vector<32x32xbf16>, vector<2x32xf32> -> vector<2x32xf32>
    %c0_38 = arith.constant 0 : index
    %c0_39 = arith.constant 0 : index
    %49 = vector.load %arg12[%c0_38, %c0_39] : memref<1x32xf32, #tpu.memory_space<vmem>>, vector<1x32xf32>
    %50 = vector.broadcast %49 : vector<1x32xf32> to vector<2x32xf32>
    %51 = arith.addf %48, %50 : vector<2x32xf32>
    %cst_40 = arith.constant 0.000000e+00 : f32
    %52 = vector.broadcast %cst_40 : f32 to vector<2x32xf32>
    %53 = arith.maximumf %51, %52 : vector<2x32xf32>
    %54 = arith.truncf %53 : vector<2x32xf32> to vector<2x32xbf16>
    %c0_41 = arith.constant 0 : index
    %c0_42 = arith.constant 0 : index
    %55 = vector.load %arg13[%c0_41, %c0_42] : memref<32x32xbf16, #tpu.memory_space<vmem>>, vector<32x32xbf16>
    %cst_43 = arith.constant dense<0.000000e+00> : vector<2x32xf32>
    %56 = tpu.matmul %54, %55, %cst_43 {dimension_numbers = #tpu.dot_dimension_numbers<[1], [0], [0], [1], [0, 0, 1, 1], [], []>} : vector<2x32xbf16>, vector<32x32xbf16>, vector<2x32xf32> -> vector<2x32xf32>
    %c0_44 = arith.constant 0 : index
    %c0_45 = arith.constant 0 : index
    %57 = vector.load %arg14[%c0_44, %c0_45] : memref<1x32xf32, #tpu.memory_space<vmem>>, vector<1x32xf32>
    %58 = vector.broadcast %57 : vector<1x32xf32> to vector<2x32xf32>
    %59 = arith.addf %56, %58 : vector<2x32xf32>
    %60 = arith.truncf %44 : vector<2x32xf32> to vector<2x32xbf16>
    %c0_46 = arith.constant 0 : index
    %c0_47 = arith.constant 0 : index
    %61 = vector.load %arg15[%c0_46, %c0_47] : memref<32x32xbf16, #tpu.memory_space<vmem>>, vector<32x32xbf16>
    %cst_48 = arith.constant dense<0.000000e+00> : vector<2x32xf32>
    %62 = tpu.matmul %60, %61, %cst_48 {dimension_numbers = #tpu.dot_dimension_numbers<[1], [0], [0], [1], [0, 0, 1, 1], [], []>} : vector<2x32xbf16>, vector<32x32xbf16>, vector<2x32xf32> -> vector<2x32xf32>
    %63 = arith.truncf %59 : vector<2x32xf32> to vector<2x32xbf16>
    %c0_49 = arith.constant 0 : index
    %c0_50 = arith.constant 0 : index
    %64 = vector.load %arg16[%c0_49, %c0_50] : memref<32x32xbf16, #tpu.memory_space<vmem>>, vector<32x32xbf16>
    %cst_51 = arith.constant dense<0.000000e+00> : vector<2x32xf32>
    %65 = tpu.matmul %63, %64, %cst_51 {dimension_numbers = #tpu.dot_dimension_numbers<[1], [0], [0], [1], [0, 0, 1, 1], [], []>} : vector<2x32xbf16>, vector<32x32xbf16>, vector<2x32xf32> -> vector<2x32xf32>
    %66 = arith.addf %62, %65 : vector<2x32xf32>
    %c0_52 = arith.constant 0 : index
    %c0_53 = arith.constant 0 : index
    %67 = vector.load %arg17[%c0_52, %c0_53] : memref<1x32xf32, #tpu.memory_space<vmem>>, vector<1x32xf32>
    %68 = vector.broadcast %67 : vector<1x32xf32> to vector<2x32xf32>
    %69 = arith.addf %66, %68 : vector<2x32xf32>
    %cst_54 = arith.constant 0.000000e+00 : f32
    %70 = vector.broadcast %cst_54 : f32 to vector<2x32xf32>
    %71 = arith.maximumf %69, %70 : vector<2x32xf32>
    %72 = arith.truncf %71 : vector<2x32xf32> to vector<2x32xbf16>
    %c0_55 = arith.constant 0 : index
    %c0_56 = arith.constant 0 : index
    %73 = vector.load %arg18[%c0_55, %c0_56] : memref<32x32xbf16, #tpu.memory_space<vmem>>, vector<32x32xbf16>
    %cst_57 = arith.constant dense<0.000000e+00> : vector<2x32xf32>
    %74 = tpu.matmul %72, %73, %cst_57 {dimension_numbers = #tpu.dot_dimension_numbers<[1], [0], [0], [1], [0, 0, 1, 1], [], []>} : vector<2x32xbf16>, vector<32x32xbf16>, vector<2x32xf32> -> vector<2x32xf32>
    %c0_58 = arith.constant 0 : index
    %c0_59 = arith.constant 0 : index
    %75 = vector.load %arg19[%c0_58, %c0_59] : memref<1x32xf32, #tpu.memory_space<vmem>>, vector<1x32xf32>
    %76 = vector.broadcast %75 : vector<1x32xf32> to vector<2x32xf32>
    %77 = arith.addf %74, %76 : vector<2x32xf32>
    %cst_60 = arith.constant 0.000000e+00 : f32
    %78 = vector.broadcast %cst_60 : f32 to vector<2x32xf32>
    %79 = arith.maximumf %77, %78 : vector<2x32xf32>
    %80 = arith.truncf %79 : vector<2x32xf32> to vector<2x32xbf16>
    %c0_61 = arith.constant 0 : index
    %c0_62 = arith.constant 0 : index
    %81 = vector.load %arg20[%c0_61, %c0_62] : memref<32x1xbf16, #tpu.memory_space<vmem>>, vector<32x1xbf16>
    %cst_63 = arith.constant dense<0.000000e+00> : vector<2x1xf32>
    %82 = tpu.matmul %80, %81, %cst_63 {dimension_numbers = #tpu.dot_dimension_numbers<[1], [0], [0], [1], [0, 0, 1, 1], [], []>} : vector<2x32xbf16>, vector<32x1xbf16>, vector<2x1xf32> -> vector<2x1xf32>
    %c0_64 = arith.constant 0 : index
    %c0_65 = arith.constant 0 : index
    %83 = vector.load %arg21[%c0_64, %c0_65] : memref<1x1xf32, #tpu.memory_space<vmem>>, vector<1x1xf32>
    %84 = vector.broadcast %83 : vector<1x1xf32> to vector<2x1xf32>
    %85 = arith.addf %82, %84 : vector<2x1xf32>
    %c0_66 = arith.constant 0 : index
    %c0_67 = arith.constant 0 : index
    %86 = vector.load %arg23[%c0_66, %c0_67] : memref<2x1xf32, #tpu.memory_space<vmem>>, vector<2x1xf32>
    tpu.vector_store %arg23[%c0_66, %c0_67], %85 {strides = array<i32>} : memref<2x1xf32, #tpu.memory_space<vmem>>, vector<2x1xf32>,
    return
  }
}

</mosaic_0001>

<llo_original>
// kernel: forward_model.4
$region0: #{forward_model.4}
  #allocation0 [shape = 'u32[]', space=smem, size = 0x4, offset = 0x4, fixed_abs, tag = 'smem constant byte address 0x4 - core index']
  #allocation1 [shape = 'u32[144,128]{1,0:T(1,128)}', space=vmem, size = 0x12000, scoped, tag = 'internal scratch']
  %s0 = inlined_call_operand.vmem [shape: bf16[12,12], index: 0, kind: input, shape index: {}]
  %s1 = inlined_call_operand.vmem [shape: bf16[12,1], index: 1, kind: input, shape index: {}]
  %s2 = inlined_call_operand.vmem [shape: bf16[1,12], index: 2, kind: input, shape index: {}]
  %s3 = inlined_call_operand.vmem [shape: bf16[12,16], index: 3, kind: input, shape index: {}]
  %s4 = inlined_call_operand.vmem [shape: bf16[2,12], index: 4, kind: input, shape index: {}]
  %s5 = inlined_call_operand.vmem [shape: bf16[16,32], index: 5, kind: input, shape index: {}]
  %s6 = inlined_call_operand.vmem [shape: f32[1,32], index: 6, kind: input, shape index: {}]
  %s7 = inlined_call_operand.vmem [shape: bf16[32,32], index: 7, kind: input, shape index: {}]
  %s8 = inlined_call_operand.vmem [shape: f32[1,32], index: 8, kind: input, shape index: {}]
  %s9 = inlined_call_operand.vmem [shape: bf16[32,32], index: 9, kind: input, shape index: {}]
  %s10 = inlined_call_operand.vmem [shape: f32[1,32], index: 10, kind: input, shape index: {}]
  %s11 = inlined_call_operand.vmem [shape: bf16[32,32], index: 11, kind: input, shape index: {}]
  %s12 = inlined_call_operand.vmem [shape: f32[2,32], index: 12, kind: output, shape index: {0}]
  %s13 = inlined_call_operand.vmem [shape: f32[2,32], index: 13, kind: output, shape index: {1}]
  %14 = xla_tuple %s12, %s13
  %s15 = sld [smem:[#allocation0]]
  $region66: #{forward_model.4} parent=0
    _
  %s17 = ssub.s32 1, %s15
  %s18 = scalar_select 0, %s17, %s15
  // Predicated region
  $region2: #{forward_model.4} parent=0 // pred_check
    _
  $region3: #{forward_model.4} parent=0 // pred_check_branch
    %20 = sbr.rel (0) target = $region5
  $region4: #{forward_model.4} parent=0 // pred_region
    _
  $region5: #{forward_model.4} parent=0 // pred_fallthru
    _
  // Predicated region
  $region6: #{forward_model.4} parent=0 // pred_check
    _
  $region7: #{forward_model.4} parent=0 // pred_check_branch
    %22 = sbr.rel (0) target = $region9
  $region8: #{forward_model.4} parent=0 // pred_region
    _
  $region9: #{forward_model.4} parent=0 // pred_fallthru
    _
  // Predicated region
  $region10: #{forward_model.4} parent=0 // pred_check
    _
  $region11: #{forward_model.4} parent=0 // pred_check_branch
    %24 = sbr.rel (0) target = $region13
  $region12: #{forward_model.4} parent=0 // pred_region
    _
  $region13: #{forward_model.4} parent=0 // pred_fallthru
    _
  // Predicated region
  $region14: #{forward_model.4} parent=0 // pred_check
    _
  $region15: #{forward_model.4} parent=0 // pred_check_branch
    %26 = sbr.rel (0) target = $region17
  $region16: #{forward_model.4} parent=0 // pred_region
    _
  $region17: #{forward_model.4} parent=0 // pred_fallthru
    _
  // Predicated region
  $region18: #{forward_model.4} parent=0 // pred_check
    _
  $region19: #{forward_model.4} parent=0 // pred_check_branch
    %28 = sbr.rel (0) target = $region21
  $region20: #{forward_model.4} parent=0 // pred_region
    _
  $region21: #{forward_model.4} parent=0 // pred_fallthru
    _
  // Predicated region
  $region22: #{forward_model.4} parent=0 // pred_check
    _
  $region23: #{forward_model.4} parent=0 // pred_check_branch
    %30 = sbr.rel (0) target = $region25
  $region24: #{forward_model.4} parent=0 // pred_region
    _
  $region25: #{forward_model.4} parent=0 // pred_fallthru
    _
  // Predicated region
  $region26: #{forward_model.4} parent=0 // pred_check
    _
  $region27: #{forward_model.4} parent=0 // pred_check_branch
    %32 = sbr.rel (0) target = $region29
  $region28: #{forward_model.4} parent=0 // pred_region
    _
  $region29: #{forward_model.4} parent=0 // pred_fallthru
    _
  // Predicated region
  $region30: #{forward_model.4} parent=0 // pred_check
    _
  $region31: #{forward_model.4} parent=0 // pred_check_branch
    %34 = sbr.rel (0) target = $region33
  $region32: #{forward_model.4} parent=0 // pred_region
    _
  $region33: #{forward_model.4} parent=0 // pred_fallthru
    _
  // Predicated region
  $region34: #{forward_model.4} parent=0 // pred_check
    _
  $region35: #{forward_model.4} parent=0 // pred_check_branch
    %36 = sbr.rel (0) target = $region37
  $region36: #{forward_model.4} parent=0 // pred_region
    _
  $region37: #{forward_model.4} parent=0 // pred_fallthru
    _
  // Predicated region
  $region38: #{forward_model.4} parent=0 // pred_check
    _
  $region39: #{forward_model.4} parent=0 // pred_check_branch
    %38 = sbr.rel (0) target = $region41
  $region40: #{forward_model.4} parent=0 // pred_region
    _
  $region41: #{forward_model.4} parent=0 // pred_fallthru
    _
  // Predicated region
  $region42: #{forward_model.4} parent=0 // pred_check
    _
  $region43: #{forward_model.4} parent=0 // pred_check_branch
    %40 = sbr.rel (0) target = $region45
  $region44: #{forward_model.4} parent=0 // pred_region
    _
  $region45: #{forward_model.4} parent=0 // pred_fallthru
    _
  // Predicated region
  $region46: #{forward_model.4} parent=0 // pred_check
    _
  $region47: #{forward_model.4} parent=0 // pred_check_branch
    %42 = sbr.rel (0) target = $region49
  $region48: #{forward_model.4} parent=0 // pred_region
    _
  $region49: #{forward_model.4} parent=0 // pred_fallthru
    _
  %v44 = vld [vmem:[%s1] sm:$0xf]
  %v45 = vld [vmem:[%s1 + $0x4] sm:$0x3]
  %v46 = vld [vmem:[%s0] sm:$0xf]
  %v47 = vld [vmem:[%s0 + $0x4] sm:$0x3]
  %49 = vset.pattern.permute.xlu0 0
  %50 = vperm.xlu0 %49, %v44
  %v51 = vpop.permute.xlu0 %50
  %v54 = vunpack.c.l.s4 839922192
  %v55 = vunpack.c.0.s8 %v54
  %v56 = vlaneseq
  %v57 = vshrl.u32 %v56, 7
  %v58 = vsub.s32 %v55, %v57
  %v59 = vrot.slane %v51, %v58
  %61 = vset.pattern.permute.xlu0 0
  %62 = vperm.xlu0 %61, %v45
  %v63 = vpop.permute.xlu0 %62
  %v66 = vunpack.c.l.s4 839922192
  %v67 = vunpack.c.0.s8 %v66
  %v68 = vlaneseq
  %v69 = vshrl.u32 %v68, 7
  %v70 = vsub.s32 %v67, %v69
  %v71 = vrot.slane %v63, %v70
  %v72 = vmul.bf16 %v59, %v46
  %v73 = vmul.bf16 %v71, %v47
  %v74 = vld [vmem:[%s2] sm:$0x1]
  %v76 = vpack.i.b16 %v74, %v74
  %v78 = vlaneseq
  %v79 = vshrl.u32 %v78, 7
  %v80 = vsub.s32 0, %v79
  %v81 = vrot.slane %v76, %v80
  %v83 = vunpack.c.l.b16 %v81
  %v84 = vpack.c.b16 %v83, %v83
  %v86 = vmul.bf16 %v72, %v84
  %v87 = vmul.bf16 %v73, %v84
  %v88 = vld [vmem:[%s3] sm:$0xf]
  %v89 = vld [vmem:[%s3 + $0x4] sm:$0x3]
  %v90 = vld [vmem:[%s5] sm:$0xf]
  %v91 = vld [vmem:[%s5 + $0x4] sm:$0xf]
  %v94 = vunpack.c.l.b16 %v88
  %v95 = vunpack.c.l.b16 %v89
  %v96 = vpack.c.b16 %v95, %v94
  %v99 = vunpack.c.l.b16 %v90
  %v100 = vunpack.c.l.b16 %v91
  %v101 = vpack.c.b16 %v100, %v99
  %vm103 = vcmask 130048
  %v105 = vsel %vm103, %v96, 0
  %107 = vmatprep.subr.bf16.mxu0 0
  %108 = vmatpush1.bf16.msra.mxu0 %v101
  %109 = vmatprep.subr.bf16.mxu0 0
  %110 = vmatpush1.bf16.msra.mxu0 0
  %111 = vmatprep.subr.bf16.mxu0 0
  %112 = vmatpush1.bf16.msra.mxu0 0
  %113 = vmatprep.subr.bf16.mxu0 0
  %114 = vmatpush1.bf16.msra.mxu0 0
  %115 = vmatprep.subr.bf16.mxu0 0
  %116 = vmatpush1.bf16.msra.mxu0 0
  %117 = vmatprep.subr.bf16.mxu0 0
  %118 = vmatpush1.bf16.msra.mxu0 0
  %119 = vmatprep.subr.bf16.mxu0 0
  %120 = vmatpush1.bf16.msra.mxu0 0
  %121 = vmatprep.subr.bf16.mxu0 0
  %122 = vmatpush1.bf16.msra.mxu0 0
  %123 = vmatprep.subr.bf16.mxu0 0
  %124 = vmatpush1.bf16.msra.mxu0 0
  %125 = vmatprep.subr.bf16.mxu0 0
  %126 = vmatpush1.bf16.msra.mxu0 0
  %127 = vmatprep.subr.bf16.mxu0 0
  %128 = vmatpush1.bf16.msra.mxu0 0
  %129 = vmatprep.subr.bf16.mxu0 0
  %130 = vmatpush1.bf16.msra.mxu0 0
  %131 = vmatprep.subr.bf16.mxu0 0
  %132 = vmatpush1.bf16.msra.mxu0 0
  %133 = vmatprep.subr.bf16.mxu0 0
  %134 = vmatpush1.bf16.msra.mxu0 0
  %135 = vmatprep.subr.bf16.mxu0 0
  %136 = vmatpush1.bf16.msra.mxu0 0
  %137 = vmatprep.subr.bf16.mxu0 0
  %138 = vmatpush1.bf16.msra.mxu0 0
  %139 = vmatprep.mubr.bf16.mxu0 0
  %140 = vmatmul.mubr.bf16.gmra.mrb[0].mxu0 %v105
  %v141 = vpop.f32.mrb[0].mxu0
  %v142 = vadd.f32 0.0, %v141
  %v143 = vpop.f32.mrb[0].mxu0
  %v144 = vpop.f32.mrb[0].mxu0
  %v145 = vadd.f32 0.0, %v144
  %v146 = vpop.f32.mrb[0].mxu0
  %147 = vdwg.mxu0
  %v148 = vpack.c.bf16 %v145, %v142
  %v149 = vld [vmem:[%s6] sm:$0x1]
  %v151 = vlaneseq
  %v152 = vshrl.u32 %v151, 7
  %v153 = vsub.s32 0, %v152
  %v154 = vrot.slane %v149, %v153
  %v158 = vunpack.c.l.b16 %v86
  %v159 = vunpack.c.l.b16 %v87
  %v160 = vpack.c.b16 %v159, %v158
  %vm161 = vcmask 97280
  %v163 = vsel %vm161, %v160, 0
  %vm165 = vcmask 1045504
  %v167 = vsel %vm165, %v148, 0
  %169 = vmatprep.subr.bf16.mxu0 0
  %170 = vmatpush1.bf16.msra.mxu0 %v167
  %171 = vmatprep.subr.bf16.mxu0 0
  %172 = vmatpush1.bf16.msra.mxu0 0
  %173 = vmatprep.subr.bf16.mxu0 0
  %174 = vmatpush1.bf16.msra.mxu0 0
  %175 = vmatprep.subr.bf16.mxu0 0
  %176 = vmatpush1.bf16.msra.mxu0 0
  %177 = vmatprep.subr.bf16.mxu0 0
  %178 = vmatpush1.bf16.msra.mxu0 0
  %179 = vmatprep.subr.bf16.mxu0 0
  %180 = vmatpush1.bf16.msra.mxu0 0
  %181 = vmatprep.subr.bf16.mxu0 0
  %182 = vmatpush1.bf16.msra.mxu0 0
  %183 = vmatprep.subr.bf16.mxu0 0
  %184 = vmatpush1.bf16.msra.mxu0 0
  %185 = vmatprep.subr.bf16.mxu0 0
  %186 = vmatpush1.bf16.msra.mxu0 0
  %187 = vmatprep.subr.bf16.mxu0 0
  %188 = vmatpush1.bf16.msra.mxu0 0
  %189 = vmatprep.subr.bf16.mxu0 0
  %190 = vmatpush1.bf16.msra.mxu0 0
  %191 = vmatprep.subr.bf16.mxu0 0
  %192 = vmatpush1.bf16.msra.mxu0 0
  %193 = vmatprep.subr.bf16.mxu0 0
  %194 = vmatpush1.bf16.msra.mxu0 0
  %195 = vmatprep.subr.bf16.mxu0 0
  %196 = vmatpush1.bf16.msra.mxu0 0
  %197 = vmatprep.subr.bf16.mxu0 0
  %198 = vmatpush1.bf16.msra.mxu0 0
  %199 = vmatprep.subr.bf16.mxu0 0
  %200 = vmatpush1.bf16.msra.mxu0 0
  %201 = vmatprep.mubr.bf16.mxu0 0
  %202 = vmatmul.mubr.bf16.gmra.mrb[0].mxu0 %v163
  %v203 = vpop.f32.mrb[0].mxu0
  %v204 = vadd.f32 %v154, %v203
  %v205 = vpop.f32.mrb[0].mxu0
  %v206 = vpop.f32.mrb[0].mxu0
  %v207 = vadd.f32 %v154, %v206
  %v208 = vpop.f32.mrb[0].mxu0
  %209 = vdwg.mxu0
  %v210 = vmax.f32 %v204, 0.0
  %v211 = vmax.f32 %v207, 0.0
  %v212 = vpack.c.bf16 %v211, %v210
  %v213 = vld [vmem:[%s7] sm:$0xf]
  %v214 = vld [vmem:[%s7 + $0x4] sm:$0xf]
  %v215 = vld [vmem:[%s7 + $0x8] sm:$0xf]
  %v216 = vld [vmem:[%s7 + $0xc] sm:$0xf]
  %v221 = vunpack.c.l.b16 %v213
  %v222 = vunpack.c.l.b16 %v214
  %v223 = vunpack.c.l.b16 %v215
  %v224 = vunpack.c.l.b16 %v216
  %v225 = vpack.c.b16 %v222, %v221
  %v226 = vpack.c.b16 %v224, %v223
  %vm229 = vcmask 261120
  %v231 = vsel %vm229, %v212, 0
  %233 = vmatprep.subr.bf16.mxu0 0
  %234 = vmatpush1.bf16.msra.mxu0 %v225
  %235 = vmatprep.subr.bf16.mxu0 0
  %236 = vmatpush1.bf16.msra.mxu0 %v226
  %237 = vmatprep.subr.bf16.mxu0 0
  %238 = vmatpush1.bf16.msra.mxu0 0
  %239 = vmatprep.subr.bf16.mxu0 0
  %240 = vmatpush1.bf16.msra.mxu0 0
  %241 = vmatprep.subr.bf16.mxu0 0
  %242 = vmatpush1.bf16.msra.mxu0 0
  %243 = vmatprep.subr.bf16.mxu0 0
  %244 = vmatpush1.bf16.msra.mxu0 0
  %245 = vmatprep.subr.bf16.mxu0 0
  %246 = vmatpush1.bf16.msra.mxu0 0
  %247 = vmatprep.subr.bf16.mxu0 0
  %248 = vmatpush1.bf16.msra.mxu0 0
  %249 = vmatprep.subr.bf16.mxu0 0
  %250 = vmatpush1.bf16.msra.mxu0 0
  %251 = vmatprep.subr.bf16.mxu0 0
  %252 = vmatpush1.bf16.msra.mxu0 0
  %253 = vmatprep.subr.bf16.mxu0 0
  %254 = vmatpush1.bf16.msra.mxu0 0
  %255 = vmatprep.subr.bf16.mxu0 0
  %256 = vmatpush1.bf16.msra.mxu0 0
  %257 = vmatprep.subr.bf16.mxu0 0
  %258 = vmatpush1.bf16.msra.mxu0 0
  %259 = vmatprep.subr.bf16.mxu0 0
  %260 = vmatpush1.bf16.msra.mxu0 0
  %261 = vmatprep.subr.bf16.mxu0 0
  %262 = vmatpush1.bf16.msra.mxu0 0
  %263 = vmatprep.subr.bf16.mxu0 0
  %264 = vmatpush1.bf16.msra.mxu0 0
  %265 = vmatprep.mubr.bf16.mxu0 0
  %266 = vmatmul.mubr.bf16.gmra.mrb[0].mxu0 %v231
  %v267 = vpop.f32.mrb[0].mxu0
  %v268 = vadd.f32 0.0, %v267
  %v269 = vpop.f32.mrb[0].mxu0
  %v270 = vpop.f32.mrb[0].mxu0
  %v271 = vadd.f32 0.0, %v270
  %v272 = vpop.f32.mrb[0].mxu0
  %273 = vdwg.mxu0
  %v274 = vpack.c.bf16 %v271, %v268
  %v275 = vld [vmem:[%s8] sm:$0x1]
  %v277 = vlaneseq
  %v278 = vshrl.u32 %v277, 7
  %v279 = vsub.s32 0, %v278
  %v280 = vrot.slane %v275, %v279
  %v283 = vsel %vm165, %v274, 0
  %285 = vmatprep.subr.bf16.mxu0 0
  %286 = vmatpush1.bf16.msra.mxu0 %v283
  %287 = vmatprep.subr.bf16.mxu0 0
  %288 = vmatpush1.bf16.msra.mxu0 0
  %289 = vmatprep.subr.bf16.mxu0 0
  %290 = vmatpush1.bf16.msra.mxu0 0
  %291 = vmatprep.subr.bf16.mxu0 0
  %292 = vmatpush1.bf16.msra.mxu0 0
  %293 = vmatprep.subr.bf16.mxu0 0
  %294 = vmatpush1.bf16.msra.mxu0 0
  %295 = vmatprep.subr.bf16.mxu0 0
  %296 = vmatpush1.bf16.msra.mxu0 0
  %297 = vmatprep.subr.bf16.mxu0 0
  %298 = vmatpush1.bf16.msra.mxu0 0
  %299 = vmatprep.subr.bf16.mxu0 0
  %300 = vmatpush1.bf16.msra.mxu0 0
  %301 = vmatprep.subr.bf16.mxu0 0
  %302 = vmatpush1.bf16.msra.mxu0 0
  %303 = vmatprep.subr.bf16.mxu0 0
  %304 = vmatpush1.bf16.msra.mxu0 0
  %305 = vmatprep.subr.bf16.mxu0 0
  %306 = vmatpush1.bf16.msra.mxu0 0
  %307 = vmatprep.subr.bf16.mxu0 0
  %308 = vmatpush1.bf16.msra.mxu0 0
  %309 = vmatprep.subr.bf16.mxu0 0
  %310 = vmatpush1.bf16.msra.mxu0 0
  %311 = vmatprep.subr.bf16.mxu0 0
  %312 = vmatpush1.bf16.msra.mxu0 0
  %313 = vmatprep.subr.bf16.mxu0 0
  %314 = vmatpush1.bf16.msra.mxu0 0
  %315 = vmatprep.subr.bf16.mxu0 0
  %316 = vmatpush1.bf16.msra.mxu0 0
  %317 = vmatprep.mubr.bf16.mxu0 0
  %318 = vmatmul.mubr.bf16.gmra.mrb[0].mxu0 %v163
  %v319 = vpop.f32.mrb[0].mxu0
  %v320 = vadd.f32 %v280, %v319
  %v321 = vpop.f32.mrb[0].mxu0
  %v322 = vpop.f32.mrb[0].mxu0
  %v323 = vadd.f32 %v280, %v322
  %v324 = vpop.f32.mrb[0].mxu0
  %325 = vdwg.mxu0
  %v326 = vmax.f32 %v320, 0.0
  %v327 = vmax.f32 %v323, 0.0
  %v328 = vpack.c.bf16 %v327, %v326
  %v329 = vld [vmem:[%s9] sm:$0xf]
  %v330 = vld [vmem:[%s9 + $0x4] sm:$0xf]
  %v331 = vld [vmem:[%s9 + $0x8] sm:$0xf]
  %v332 = vld [vmem:[%s9 + $0xc] sm:$0xf]
  %v337 = vunpack.c.l.b16 %v329
  %v338 = vunpack.c.l.b16 %v330
  %v339 = vunpack.c.l.b16 %v331
  %v340 = vunpack.c.l.b16 %v332
  %v341 = vpack.c.b16 %v338, %v337
  %v342 = vpack.c.b16 %v340, %v339
  %v346 = vsel %vm229, %v328, 0
  %348 = vmatprep.subr.bf16.mxu0 0
  %349 = vmatpush1.bf16.msra.mxu0 %v341
  %350 = vmatprep.subr.bf16.mxu0 0
  %351 = vmatpush1.bf16.msra.mxu0 %v342
  %352 = vmatprep.subr.bf16.mxu0 0
  %353 = vmatpush1.bf16.msra.mxu0 0
  %354 = vmatprep.subr.bf16.mxu0 0
  %355 = vmatpush1.bf16.msra.mxu0 0
  %356 = vmatprep.subr.bf16.mxu0 0
  %357 = vmatpush1.bf16.msra.mxu0 0
  %358 = vmatprep.subr.bf16.mxu0 0
  %359 = vmatpush1.bf16.msra.mxu0 0
  %360 = vmatprep.subr.bf16.mxu0 0
  %361 = vmatpush1.bf16.msra.mxu0 0
  %362 = vmatprep.subr.bf16.mxu0 0
  %363 = vmatpush1.bf16.msra.mxu0 0
  %364 = vmatprep.subr.bf16.mxu0 0
  %365 = vmatpush1.bf16.msra.mxu0 0
  %366 = vmatprep.subr.bf16.mxu0 0
  %367 = vmatpush1.bf16.msra.mxu0 0
  %368 = vmatprep.subr.bf16.mxu0 0
  %369 = vmatpush1.bf16.msra.mxu0 0
  %370 = vmatprep.subr.bf16.mxu0 0
  %371 = vmatpush1.bf16.msra.mxu0 0
  %372 = vmatprep.subr.bf16.mxu0 0
  %373 = vmatpush1.bf16.msra.mxu0 0
  %374 = vmatprep.subr.bf16.mxu0 0
  %375 = vmatpush1.bf16.msra.mxu0 0
  %376 = vmatprep.subr.bf16.mxu0 0
  %377 = vmatpush1.bf16.msra.mxu0 0
  %378 = vmatprep.subr.bf16.mxu0 0
  %379 = vmatpush1.bf16.msra.mxu0 0
  %380 = vmatprep.mubr.bf16.mxu0 0
  %381 = vmatmul.mubr.bf16.gmra.mrb[0].mxu0 %v346
  %v382 = vpop.f32.mrb[0].mxu0
  %v383 = vadd.f32 0.0, %v382
  %v384 = vpop.f32.mrb[0].mxu0
  %v385 = vpop.f32.mrb[0].mxu0
  %v386 = vadd.f32 0.0, %v385
  %v387 = vpop.f32.mrb[0].mxu0
  %388 = vdwg.mxu0
  %v389 = vpack.c.bf16 %v386, %v383
  %v390 = vld [vmem:[%s10] sm:$0x1]
  %v392 = vlaneseq
  %v393 = vshrl.u32 %v392, 7
  %v394 = vsub.s32 0, %v393
  %v395 = vrot.slane %v390, %v394
  %v398 = vsel %vm165, %v389, 0
  %400 = vmatprep.subr.bf16.mxu0 0
  %401 = vmatpush1.bf16.msra.mxu0 %v398
  %402 = vmatprep.subr.bf16.mxu0 0
  %403 = vmatpush1.bf16.msra.mxu0 0
  %404 = vmatprep.subr.bf16.mxu0 0
  %405 = vmatpush1.bf16.msra.mxu0 0
  %406 = vmatprep.subr.bf16.mxu0 0
  %407 = vmatpush1.bf16.msra.mxu0 0
  %408 = vmatprep.subr.bf16.mxu0 0
  %409 = vmatpush1.bf16.msra.mxu0 0
  %410 = vmatprep.subr.bf16.mxu0 0
  %411 = vmatpush1.bf16.msra.mxu0 0
  %412 = vmatprep.subr.bf16.mxu0 0
  %413 = vmatpush1.bf16.msra.mxu0 0
  %414 = vmatprep.subr.bf16.mxu0 0
  %415 = vmatpush1.bf16.msra.mxu0 0
  %416 = vmatprep.subr.bf16.mxu0 0
  %417 = vmatpush1.bf16.msra.mxu0 0
  %418 = vmatprep.subr.bf16.mxu0 0
  %419 = vmatpush1.bf16.msra.mxu0 0
  %420 = vmatprep.subr.bf16.mxu0 0
  %421 = vmatpush1.bf16.msra.mxu0 0
  %422 = vmatprep.subr.bf16.mxu0 0
  %423 = vmatpush1.bf16.msra.mxu0 0
  %424 = vmatprep.subr.bf16.mxu0 0
  %425 = vmatpush1.bf16.msra.mxu0 0
  %426 = vmatprep.subr.bf16.mxu0 0
  %427 = vmatpush1.bf16.msra.mxu0 0
  %428 = vmatprep.subr.bf16.mxu0 0
  %429 = vmatpush1.bf16.msra.mxu0 0
  %430 = vmatprep.subr.bf16.mxu0 0
  %431 = vmatpush1.bf16.msra.mxu0 0
  %432 = vmatprep.mubr.bf16.mxu0 0
  %433 = vmatmul.mubr.bf16.gmra.mrb[0].mxu0 %v163
  %v434 = vpop.f32.mrb[0].mxu0
  %v435 = vadd.f32 %v395, %v434
  %v436 = vpop.f32.mrb[0].mxu0
  %v437 = vpop.f32.mrb[0].mxu0
  %v438 = vadd.f32 %v395, %v437
  %v439 = vpop.f32.mrb[0].mxu0
  %440 = vdwg.mxu0
  %v441 = vld [vmem:[%s4] sm:$0x1]
  %v442 = vpack.c.bf16 %v438, %v435
  %v444 = vsel %vm161, %v441, 0
  %v447 = vsel %vm165, %v442, 0
  %449 = vmatprep.subr.bf16.mxu0 0
  %450 = vmatpush1.bf16.msra.mxu0 %v447
  %451 = vmatprep.subr.bf16.mxu0 0
  %452 = vmatpush1.bf16.msra.mxu0 0
  %453 = vmatprep.subr.bf16.mxu0 0
  %454 = vmatpush1.bf16.msra.mxu0 0
  %455 = vmatprep.subr.bf16.mxu0 0
  %456 = vmatpush1.bf16.msra.mxu0 0
  %457 = vmatprep.subr.bf16.mxu0 0
  %458 = vmatpush1.bf16.msra.mxu0 0
  %459 = vmatprep.subr.bf16.mxu0 0
  %460 = vmatpush1.bf16.msra.mxu0 0
  %461 = vmatprep.subr.bf16.mxu0 0
  %462 = vmatpush1.bf16.msra.mxu0 0
  %463 = vmatprep.subr.bf16.mxu0 0
  %464 = vmatpush1.bf16.msra.mxu0 0
  %465 = vmatprep.subr.bf16.mxu0 0
  %466 = vmatpush1.bf16.msra.mxu0 0
  %467 = vmatprep.subr.bf16.mxu0 0
  %468 = vmatpush1.bf16.msra.mxu0 0
  %469 = vmatprep.subr.bf16.mxu0 0
  %470 = vmatpush1.bf16.msra.mxu0 0
  %471 = vmatprep.subr.bf16.mxu0 0
  %472 = vmatpush1.bf16.msra.mxu0 0
  %473 = vmatprep.subr.bf16.mxu0 0
  %474 = vmatpush1.bf16.msra.mxu0 0
  %475 = vmatprep.subr.bf16.mxu0 0
  %476 = vmatpush1.bf16.msra.mxu0 0
  %477 = vmatprep.subr.bf16.mxu0 0
  %478 = vmatpush1.bf16.msra.mxu0 0
  %479 = vmatprep.subr.bf16.mxu0 0
  %480 = vmatpush1.bf16.msra.mxu0 0
  %481 = vmatprep.mubr.bf16.mxu0 0
  %482 = vmatmul.mubr.bf16.gmra.mrb[0].mxu0 %v444
  %v483 = vpop.f32.mrb[0].mxu0
  %v484 = vadd.f32 0.0, %v483
  %v485 = vpop.f32.mrb[0].mxu0
  %v486 = vpop.f32.mrb[0].mxu0
  %v487 = vpop.f32.mrb[0].mxu0
  %488 = vdwg.mxu0
  %vm489 = vcmask 254976
  %490 = vst.msk [vmem:[%s12] sm:$0x3] %vm489, %v484
  %v491 = vpack.c.bf16 %v484, %v484
  %v492 = vld [vmem:[%s11] sm:$0xf]
  %v493 = vld [vmem:[%s11 + $0x4] sm:$0xf]
  %v494 = vld [vmem:[%s11 + $0x8] sm:$0xf]
  %v495 = vld [vmem:[%s11 + $0xc] sm:$0xf]
  %v500 = vunpack.c.l.b16 %v492
  %v501 = vunpack.c.l.b16 %v493
  %v502 = vunpack.c.l.b16 %v494
  %v503 = vunpack.c.l.b16 %v495
  %v504 = vpack.c.b16 %v501, %v500
  %v505 = vpack.c.b16 %v503, %v502
  %v509 = vsel %vm229, %v491, 0
  %511 = vmatprep.subr.bf16.mxu0 0
  %512 = vmatpush1.bf16.msra.mxu0 %v504
  %513 = vmatprep.subr.bf16.mxu0 0
  %514 = vmatpush1.bf16.msra.mxu0 %v505
  %515 = vmatprep.subr.bf16.mxu0 0
  %516 = vmatpush1.bf16.msra.mxu0 0
  %517 = vmatprep.subr.bf16.mxu0 0
  %518 = vmatpush1.bf16.msra.mxu0 0
  %519 = vmatprep.subr.bf16.mxu0 0
  %520 = vmatpush1.bf16.msra.mxu0 0
  %521 = vmatprep.subr.bf16.mxu0 0
  %522 = vmatpush1.bf16.msra.mxu0 0
  %523 = vmatprep.subr.bf16.mxu0 0
  %524 = vmatpush1.bf16.msra.mxu0 0
  %525 = vmatprep.subr.bf16.mxu0 0
  %526 = vmatpush1.bf16.msra.mxu0 0
  %527 = vmatprep.subr.bf16.mxu0 0
  %528 = vmatpush1.bf16.msra.mxu0 0
  %529 = vmatprep.subr.bf16.mxu0 0
  %530 = vmatpush1.bf16.msra.mxu0 0
  %531 = vmatprep.subr.bf16.mxu0 0
  %532 = vmatpush1.bf16.msra.mxu0 0
  %533 = vmatprep.subr.bf16.mxu0 0
  %534 = vmatpush1.bf16.msra.mxu0 0
  %535 = vmatprep.subr.bf16.mxu0 0
  %536 = vmatpush1.bf16.msra.mxu0 0
  %537 = vmatprep.subr.bf16.mxu0 0
  %538 = vmatpush1.bf16.msra.mxu0 0
  %539 = vmatprep.subr.bf16.mxu0 0
  %540 = vmatpush1.bf16.msra.mxu0 0
  %541 = vmatprep.subr.bf16.mxu0 0
  %542 = vmatpush1.bf16.msra.mxu0 0
  %543 = vmatprep.mubr.bf16.mxu0 0
  %544 = vmatmul.mubr.bf16.gmra.mrb[0].mxu0 %v509
  %v545 = vpop.f32.mrb[0].mxu0
  %v546 = vadd.f32 0.0, %v545
  %v547 = vpop.f32.mrb[0].mxu0
  %v548 = vpop.f32.mrb[0].mxu0
  %v549 = vpop.f32.mrb[0].mxu0
  %550 = vdwg.mxu0
  %551 = vst.msk [vmem:[%s13] sm:$0x3] %vm489, %v546
  // Predicated region
  $region50: #{forward_model.4} parent=0 // pred_check
    _
  $region51: #{forward_model.4} parent=0 // pred_check_branch
    %553 = sbr.rel (0) target = $region53
  $region52: #{forward_model.4} parent=0 // pred_region
    _
  $region53: #{forward_model.4} parent=0 // pred_fallthru
    _
  // Predicated region
  $region54: #{forward_model.4} parent=0 // pred_check
    _
  $region55: #{forward_model.4} parent=0 // pred_check_branch
    %555 = sbr.rel (0) target = $region57
  $region56: #{forward_model.4} parent=0 // pred_region
    _
  $region57: #{forward_model.4} parent=0 // pred_fallthru
    _
  // Predicated region
  $region58: #{forward_model.4} parent=0 // pred_check
    _
  $region59: #{forward_model.4} parent=0 // pred_check_branch
    %557 = sbr.rel (0) target = $region61
  $region60: #{forward_model.4} parent=0 // pred_region
    _
  $region61: #{forward_model.4} parent=0 // pred_fallthru
    _
  // Predicated region
  $region62: #{forward_model.4} parent=0 // pred_check
    _
  $region63: #{forward_model.4} parent=0 // pred_check_branch
    %559 = sbr.rel (0) target = $region65
  $region64: #{forward_model.4} parent=0 // pred_region
    _
  $region65: #{forward_model.4} parent=0 // pred_fallthru
    _

// kernel: forward_model.3
$region0: #{forward_model.3}
  #allocation0 [shape = 'u32[]', space=smem, size = 0x4, offset = 0x4, fixed_abs, tag = 'smem constant byte address 0x4 - core index']
  #allocation1 [shape = 'u32[144,128]{1,0:T(1,128)}', space=vmem, size = 0x12000, scoped, tag = 'internal scratch']
  %s0 = inlined_call_operand.vmem [shape: bf16[24,24], index: 0, kind: input, shape index: {}]
  %s1 = inlined_call_operand.vmem [shape: bf16[24,1], index: 1, kind: input, shape index: {}]
  %s2 = inlined_call_operand.vmem [shape: bf16[1,24], index: 2, kind: input, shape index: {}]
  %s3 = inlined_call_operand.vmem [shape: bf16[24,16], index: 3, kind: input, shape index: {}]
  %s4 = inlined_call_operand.vmem [shape: bf16[16,32], index: 4, kind: input, shape index: {}]
  %s5 = inlined_call_operand.vmem [shape: f32[1,32], index: 5, kind: input, shape index: {}]
  %s6 = inlined_call_operand.vmem [shape: bf16[32,32], index: 6, kind: input, shape index: {}]
  %s7 = inlined_call_operand.vmem [shape: f32[1,32], index: 7, kind: input, shape index: {}]
  %s8 = inlined_call_operand.vmem [shape: bf16[32,32], index: 8, kind: input, shape index: {}]
  %s9 = inlined_call_operand.vmem [shape: f32[1,32], index: 9, kind: input, shape index: {}]
  %s10 = inlined_call_operand.vmem [shape: bf16[32,32], index: 10, kind: input, shape index: {}]
  %s11 = inlined_call_operand.vmem [shape: f32[1,32], index: 11, kind: input, shape index: {}]
  %s12 = inlined_call_operand.vmem [shape: bf16[32,32], index: 12, kind: input, shape index: {}]
  %s13 = inlined_call_operand.vmem [shape: bf16[24,32], index: 13, kind: output, shape index: {0}]
  %s14 = inlined_call_operand.vmem [shape: f32[24,32], index: 14, kind: output, shape index: {1}]
  %15 = xla_tuple %s13, %s14
  %s16 = sld [smem:[#allocation0]]
  $region70: #{forward_model.3} parent=0
    _
  %s18 = ssub.s32 1, %s16
  %s19 = scalar_select 0, %s18, %s16
  // Predicated region
  $region2: #{forward_model.3} parent=0 // pred_check
    _
  $region3: #{forward_model.3} parent=0 // pred_check_branch
    %21 = sbr.rel (0) target = $region5
  $region4: #{forward_model.3} parent=0 // pred_region
    _
  $region5: #{forward_model.3} parent=0 // pred_fallthru
    _
  // Predicated region
  $region6: #{forward_model.3} parent=0 // pred_check
    _
  $region7: #{forward_model.3} parent=0 // pred_check_branch
    %23 = sbr.rel (0) target = $region9
  $region8: #{forward_model.3} parent=0 // pred_region
    _
  $region9: #{forward_model.3} parent=0 // pred_fallthru
    _
  // Predicated region
  $region10: #{forward_model.3} parent=0 // pred_check
    _
  $region11: #{forward_model.3} parent=0 // pred_check_branch
    %25 = sbr.rel (0) target = $region13
  $region12: #{forward_model.3} parent=0 // pred_region
    _
  $region13: #{forward_model.3} parent=0 // pred_fallthru
    _
  // Predicated region
  $region14: #{forward_model.3} parent=0 // pred_check
    _
  $region15: #{forward_model.3} parent=0 // pred_check_branch
    %27 = sbr.rel (0) target = $region17
  $region16: #{forward_model.3} parent=0 // pred_region
    _
  $region17: #{forward_model.3} parent=0 // pred_fallthru
    _
  // Predicated region
  $region18: #{forward_model.3} parent=0 // pred_check
    _
  $region19: #{forward_model.3} parent=0 // pred_check_branch
    %29 = sbr.rel (0) target = $region21
  $region20: #{forward_model.3} parent=0 // pred_region
    _
  $region21: #{forward_model.3} parent=0 // pred_fallthru
    _
  // Predicated region
  $region22: #{forward_model.3} parent=0 // pred_check
    _
  $region23: #{forward_model.3} parent=0 // pred_check_branch
    %31 = sbr.rel (0) target = $region25
  $region24: #{forward_model.3} parent=0 // pred_region
    _
  $region25: #{forward_model.3} parent=0 // pred_fallthru
    _
  // Predicated region
  $region26: #{forward_model.3} parent=0 // pred_check
    _
  $region27: #{forward_model.3} parent=0 // pred_check_branch
    %33 = sbr.rel (0) target = $region29
  $region28: #{forward_model.3} parent=0 // pred_region
    _
  $region29: #{forward_model.3} parent=0 // pred_fallthru
    _
  // Predicated region
  $region30: #{forward_model.3} parent=0 // pred_check
    _
  $region31: #{forward_model.3} parent=0 // pred_check_branch
    %35 = sbr.rel (0) target = $region33
  $region32: #{forward_model.3} parent=0 // pred_region
    _
  $region33: #{forward_model.3} parent=0 // pred_fallthru
    _
  // Predicated region
  $region34: #{forward_model.3} parent=0 // pred_check
    _
  $region35: #{forward_model.3} parent=0 // pred_check_branch
    %37 = sbr.rel (0) target = $region37
  $region36: #{forward_model.3} parent=0 // pred_region
    _
  $region37: #{forward_model.3} parent=0 // pred_fallthru
    _
  // Predicated region
  $region38: #{forward_model.3} parent=0 // pred_check
    _
  $region39: #{forward_model.3} parent=0 // pred_check_branch
    %39 = sbr.rel (0) target = $region41
  $region40: #{forward_model.3} parent=0 // pred_region
    _
  $region41: #{forward_model.3} parent=0 // pred_fallthru
    _
  // Predicated region
  $region42: #{forward_model.3} parent=0 // pred_check
    _
  $region43: #{forward_model.3} parent=0 // pred_check_branch
    %41 = sbr.rel (0) target = $region45
  $region44: #{forward_model.3} parent=0 // pred_region
    _
  $region45: #{forward_model.3} parent=0 // pred_fallthru
    _
  // Predicated region
  $region46: #{forward_model.3} parent=0 // pred_check
    _
  $region47: #{forward_model.3} parent=0 // pred_check_branch
    %43 = sbr.rel (0) target = $region49
  $region48: #{forward_model.3} parent=0 // pred_region
    _
  $region49: #{forward_model.3} parent=0 // pred_fallthru
    _
  // Predicated region
  $region50: #{forward_model.3} parent=0 // pred_check
    _
  $region51: #{forward_model.3} parent=0 // pred_check_branch
    %45 = sbr.rel (0) target = $region53
  $region52: #{forward_model.3} parent=0 // pred_region
    _
  $region53: #{forward_model.3} parent=0 // pred_fallthru
    _
  %v47 = vld [vmem:[%s1] sm:$0xf]
  %v48 = vld [vmem:[%s1 + $0x4] sm:$0xf]
  %v49 = vld [vmem:[%s1 + $0x8] sm:$0xf]
  %v50 = vld [vmem:[%s0] sm:$0xf]
  %v51 = vld [vmem:[%s0 + $0x4] sm:$0xf]
  %v52 = vld [vmem:[%s0 + $0x8] sm:$0xf]
  %54 = vset.pattern.permute.xlu0 0
  %55 = vperm.xlu0 %54, %v47
  %v56 = vpop.permute.xlu0 %55
  %v59 = vunpack.c.l.s4 839922192
  %v60 = vunpack.c.0.s8 %v59
  %v61 = vlaneseq
  %v62 = vshrl.u32 %v61, 7
  %v63 = vsub.s32 %v60, %v62
  %v64 = vrot.slane %v56, %v63
  %66 = vset.pattern.permute.xlu0 0
  %67 = vperm.xlu0 %66, %v48
  %v68 = vpop.permute.xlu0 %67
  %v71 = vunpack.c.l.s4 839922192
  %v72 = vunpack.c.0.s8 %v71
  %v73 = vlaneseq
  %v74 = vshrl.u32 %v73, 7
  %v75 = vsub.s32 %v72, %v74
  %v76 = vrot.slane %v68, %v75
  %78 = vset.pattern.permute.xlu0 0
  %79 = vperm.xlu0 %78, %v49
  %v80 = vpop.permute.xlu0 %79
  %v83 = vunpack.c.l.s4 839922192
  %v84 = vunpack.c.0.s8 %v83
  %v85 = vlaneseq
  %v86 = vshrl.u32 %v85, 7
  %v87 = vsub.s32 %v84, %v86
  %v88 = vrot.slane %v80, %v87
  %v89 = vmul.bf16 %v64, %v50
  %v90 = vmul.bf16 %v76, %v51
  %v91 = vmul.bf16 %v88, %v52
  %v92 = vld [vmem:[%s2] sm:$0x1]
  %v94 = vpack.i.b16 %v92, %v92
  %v96 = vlaneseq
  %v97 = vshrl.u32 %v96, 7
  %v98 = vsub.s32 0, %v97
  %v99 = vrot.slane %v94, %v98
  %v101 = vunpack.c.l.b16 %v99
  %v102 = vpack.c.b16 %v101, %v101
  %v104 = vmul.bf16 %v89, %v102
  %v105 = vmul.bf16 %v90, %v102
  %v106 = vmul.bf16 %v91, %v102
  %v107 = vld [vmem:[%s3] sm:$0xf]
  %v108 = vld [vmem:[%s3 + $0x4] sm:$0xf]
  %v109 = vld [vmem:[%s3 + $0x8] sm:$0xf]
  %v110 = vld [vmem:[%s4] sm:$0xf]
  %v111 = vld [vmem:[%s4 + $0x4] sm:$0xf]
  %v115 = vunpack.c.l.b16 %v107
  %v116 = vunpack.c.l.b16 %v108
  %v117 = vunpack.c.l.b16 %v109
  %v118 = vpack.c.b16 %v116, %v115
  %v119 = vpack.c.b16 %v117, %v117
  %v122 = vunpack.c.l.b16 %v110
  %v123 = vunpack.c.l.b16 %v111
  %v124 = vpack.c.b16 %v123, %v122
  %vm126 = vcmask 130048
  %v128 = vsel %vm126, %v118, 0
  %v131 = vsel %vm126, %v119, 0
  %133 = vmatprep.subr.bf16.mxu0 0
  %134 = vmatpush1.bf16.msra.mxu0 %v124
  %135 = vmatprep.subr.bf16.mxu0 0
  %136 = vmatpush1.bf16.msra.mxu0 0
  %137 = vmatprep.subr.bf16.mxu0 0
  %138 = vmatpush1.bf16.msra.mxu0 0
  %139 = vmatprep.subr.bf16.mxu0 0
  %140 = vmatpush1.bf16.msra.mxu0 0
  %141 = vmatprep.subr.bf16.mxu0 0
  %142 = vmatpush1.bf16.msra.mxu0 0
  %143 = vmatprep.subr.bf16.mxu0 0
  %144 = vmatpush1.bf16.msra.mxu0 0
  %145 = vmatprep.subr.bf16.mxu0 0
  %146 = vmatpush1.bf16.msra.mxu0 0
  %147 = vmatprep.subr.bf16.mxu0 0
  %148 = vmatpush1.bf16.msra.mxu0 0
  %149 = vmatprep.subr.bf16.mxu0 0
  %150 = vmatpush1.bf16.msra.mxu0 0
  %151 = vmatprep.subr.bf16.mxu0 0
  %152 = vmatpush1.bf16.msra.mxu0 0
  %153 = vmatprep.subr.bf16.mxu0 0
  %154 = vmatpush1.bf16.msra.mxu0 0
  %155 = vmatprep.subr.bf16.mxu0 0
  %156 = vmatpush1.bf16.msra.mxu0 0
  %157 = vmatprep.subr.bf16.mxu0 0
  %158 = vmatpush1.bf16.msra.mxu0 0
  %159 = vmatprep.subr.bf16.mxu0 0
  %160 = vmatpush1.bf16.msra.mxu0 0
  %161 = vmatprep.subr.bf16.mxu0 0
  %162 = vmatpush1.bf16.msra.mxu0 0
  %163 = vmatprep.subr.bf16.mxu0 0
  %164 = vmatpush1.bf16.msra.mxu0 0
  %165 = vmatprep.mubr.bf16.mxu0 0
  %166 = vmatmul.mubr.bf16.gmra.mrb[0].mxu0 %v128
  %v167 = vpop.f32.mrb[0].mxu0
  %v168 = vadd.f32 0.0, %v167
  %v169 = vpop.f32.mrb[0].mxu0
  %v170 = vpop.f32.mrb[0].mxu0
  %v171 = vadd.f32 0.0, %v170
  %v172 = vpop.f32.mrb[0].mxu0
  %173 = vmatprep.mubr.bf16.mxu0 0
  %174 = vmatmul.mubr.bf16.gmra.mrb[0].mxu0 %v131
  %v175 = vpop.f32.mrb[0].mxu0
  %v176 = vadd.f32 0.0, %v175
  %v177 = vpop.f32.mrb[0].mxu0
  %v178 = vpop.f32.mrb[0].mxu0
  %v179 = vpop.f32.mrb[0].mxu0
  %180 = vdwg.mxu0
  %v181 = vpack.c.bf16 %v171, %v168
  %v182 = vpack.c.bf16 %v176, %v176
  %v183 = vld [vmem:[%s5] sm:$0x1]
  %v185 = vlaneseq
  %v186 = vshrl.u32 %v185, 7
  %v187 = vsub.s32 0, %v186
  %v188 = vrot.slane %v183, %v187
  %v193 = vunpack.c.l.b16 %v104
  %v194 = vunpack.c.l.b16 %v105
  %v195 = vunpack.c.l.b16 %v106
  %v196 = vpack.c.b16 %v194, %v193
  %v197 = vpack.c.b16 %v195, %v195
  %vm198 = vcmask 195584
  %v200 = vsel %vm198, %v196, 0
  %v203 = vsel %vm198, %v197, 0
  %vm205 = vcmask 1043456
  %v207 = vsel %vm205, %v182, 0
  %209 = vmatprep.subr.bf16.mxu0 0
  %210 = vmatpush1.bf16.msra.mxu0 %v181
  %211 = vmatprep.subr.bf16.mxu0 0
  %212 = vmatpush1.bf16.msra.mxu0 %v207
  %213 = vmatprep.subr.bf16.mxu0 0
  %214 = vmatpush1.bf16.msra.mxu0 0
  %215 = vmatprep.subr.bf16.mxu0 0
  %216 = vmatpush1.bf16.msra.mxu0 0
  %217 = vmatprep.subr.bf16.mxu0 0
  %218 = vmatpush1.bf16.msra.mxu0 0
  %219 = vmatprep.subr.bf16.mxu0 0
  %220 = vmatpush1.bf16.msra.mxu0 0
  %221 = vmatprep.subr.bf16.mxu0 0
  %222 = vmatpush1.bf16.msra.mxu0 0
  %223 = vmatprep.subr.bf16.mxu0 0
  %224 = vmatpush1.bf16.msra.mxu0 0
  %225 = vmatprep.subr.bf16.mxu0 0
  %226 = vmatpush1.bf16.msra.mxu0 0
  %227 = vmatprep.subr.bf16.mxu0 0
  %228 = vmatpush1.bf16.msra.mxu0 0
  %229 = vmatprep.subr.bf16.mxu0 0
  %230 = vmatpush1.bf16.msra.mxu0 0
  %231 = vmatprep.subr.bf16.mxu0 0
  %232 = vmatpush1.bf16.msra.mxu0 0
  %233 = vmatprep.subr.bf16.mxu0 0
  %234 = vmatpush1.bf16.msra.mxu0 0
  %235 = vmatprep.subr.bf16.mxu0 0
  %236 = vmatpush1.bf16.msra.mxu0 0
  %237 = vmatprep.subr.bf16.mxu0 0
  %238 = vmatpush1.bf16.msra.mxu0 0
  %239 = vmatprep.subr.bf16.mxu0 0
  %240 = vmatpush1.bf16.msra.mxu0 0
  %241 = vmatprep.mubr.bf16.mxu0 0
  %242 = vmatmul.mubr.bf16.gmra.mrb[0].mxu0 %v200
  %v243 = vpop.f32.mrb[0].mxu0
  %v244 = vadd.f32 %v188, %v243
  %v245 = vpop.f32.mrb[0].mxu0
  %v246 = vpop.f32.mrb[0].mxu0
  %v247 = vadd.f32 %v188, %v246
  %v248 = vpop.f32.mrb[0].mxu0
  %249 = vmatprep.mubr.bf16.mxu0 0
  %250 = vmatmul.mubr.bf16.gmra.mrb[0].mxu0 %v203
  %v251 = vpop.f32.mrb[0].mxu0
  %v252 = vadd.f32 %v188, %v251
  %v253 = vpop.f32.mrb[0].mxu0
  %v254 = vpop.f32.mrb[0].mxu0
  %v255 = vpop.f32.mrb[0].mxu0
  %256 = vdwg.mxu0
  %v257 = vmax.f32 %v244, 0.0
  %v258 = vmax.f32 %v247, 0.0
  %v259 = vmax.f32 %v252, 0.0
  %v260 = vpack.c.bf16 %v258, %v257
  %v261 = vpack.c.bf16 %v259, %v259
  %v262 = vld [vmem:[%s6] sm:$0xf]
  %v263 = vld [vmem:[%s6 + $0x4] sm:$0xf]
  %v264 = vld [vmem:[%s6 + $0x8] sm:$0xf]
  %v265 = vld [vmem:[%s6 + $0xc] sm:$0xf]
  %v270 = vunpack.c.l.b16 %v262
  %v271 = vunpack.c.l.b16 %v263
  %v272 = vunpack.c.l.b16 %v264
  %v273 = vunpack.c.l.b16 %v265
  %v274 = vpack.c.b16 %v271, %v270
  %v275 = vpack.c.b16 %v273, %v272
  %vm278 = vcmask 261120
  %v280 = vsel %vm278, %v260, 0
  %v283 = vsel %vm278, %v261, 0
  %285 = vmatprep.subr.bf16.mxu0 0
  %286 = vmatpush1.bf16.msra.mxu0 %v274
  %287 = vmatprep.subr.bf16.mxu0 0
  %288 = vmatpush1.bf16.msra.mxu0 %v275
  %289 = vmatprep.subr.bf16.mxu0 0
  %290 = vmatpush1.bf16.msra.mxu0 0
  %291 = vmatprep.subr.bf16.mxu0 0
  %292 = vmatpush1.bf16.msra.mxu0 0
  %293 = vmatprep.subr.bf16.mxu0 0
  %294 = vmatpush1.bf16.msra.mxu0 0
  %295 = vmatprep.subr.bf16.mxu0 0
  %296 = vmatpush1.bf16.msra.mxu0 0
  %297 = vmatprep.subr.bf16.mxu0 0
  %298 = vmatpush1.bf16.msra.mxu0 0
  %299 = vmatprep.subr.bf16.mxu0 0
  %300 = vmatpush1.bf16.msra.mxu0 0
  %301 = vmatprep.subr.bf16.mxu0 0
  %302 = vmatpush1.bf16.msra.mxu0 0
  %303 = vmatprep.subr.bf16.mxu0 0
  %304 = vmatpush1.bf16.msra.mxu0 0
  %305 = vmatprep.subr.bf16.mxu0 0
  %306 = vmatpush1.bf16.msra.mxu0 0
  %307 = vmatprep.subr.bf16.mxu0 0
  %308 = vmatpush1.bf16.msra.mxu0 0
  %309 = vmatprep.subr.bf16.mxu0 0
  %310 = vmatpush1.bf16.msra.mxu0 0
  %311 = vmatprep.subr.bf16.mxu0 0
  %312 = vmatpush1.bf16.msra.mxu0 0
  %313 = vmatprep.subr.bf16.mxu0 0
  %314 = vmatpush1.bf16.msra.mxu0 0
  %315 = vmatprep.subr.bf16.mxu0 0
  %316 = vmatpush1.bf16.msra.mxu0 0
  %317 = vmatprep.mubr.bf16.mxu0 0
  %318 = vmatmul.mubr.bf16.gmra.mrb[0].mxu0 %v280
  %v319 = vpop.f32.mrb[0].mxu0
  %v320 = vadd.f32 0.0, %v319
  %v321 = vpop.f32.mrb[0].mxu0
  %v322 = vpop.f32.mrb[0].mxu0
  %v323 = vadd.f32 0.0, %v322
  %v324 = vpop.f32.mrb[0].mxu0
  %325 = vmatprep.mubr.bf16.mxu0 0
  %326 = vmatmul.mubr.bf16.gmra.mrb[0].mxu0 %v283
  %v327 = vpop.f32.mrb[0].mxu0
  %v328 = vadd.f32 0.0, %v327
  %v329 = vpop.f32.mrb[0].mxu0
  %v330 = vpop.f32.mrb[0].mxu0
  %v331 = vpop.f32.mrb[0].mxu0
  %332 = vdwg.mxu0
  %v333 = vpack.c.bf16 %v323, %v320
  %v334 = vpack.c.bf16 %v328, %v328
  %v335 = vld [vmem:[%s7] sm:$0x1]
  %v337 = vlaneseq
  %v338 = vshrl.u32 %v337, 7
  %v339 = vsub.s32 0, %v338
  %v340 = vrot.slane %v335, %v339
  %v343 = vsel %vm205, %v334, 0
  %345 = vmatprep.subr.bf16.mxu0 0
  %346 = vmatpush1.bf16.msra.mxu0 %v333
  %347 = vmatprep.subr.bf16.mxu0 0
  %348 = vmatpush1.bf16.msra.mxu0 %v343
  %349 = vmatprep.subr.bf16.mxu0 0
  %350 = vmatpush1.bf16.msra.mxu0 0
  %351 = vmatprep.subr.bf16.mxu0 0
  %352 = vmatpush1.bf16.msra.mxu0 0
  %353 = vmatprep.subr.bf16.mxu0 0
  %354 = vmatpush1.bf16.msra.mxu0 0
  %355 = vmatprep.subr.bf16.mxu0 0
  %356 = vmatpush1.bf16.msra.mxu0 0
  %357 = vmatprep.subr.bf16.mxu0 0
  %358 = vmatpush1.bf16.msra.mxu0 0
  %359 = vmatprep.subr.bf16.mxu0 0
  %360 = vmatpush1.bf16.msra.mxu0 0
  %361 = vmatprep.subr.bf16.mxu0 0
  %362 = vmatpush1.bf16.msra.mxu0 0
  %363 = vmatprep.subr.bf16.mxu0 0
  %364 = vmatpush1.bf16.msra.mxu0 0
  %365 = vmatprep.subr.bf16.mxu0 0
  %366 = vmatpush1.bf16.msra.mxu0 0
  %367 = vmatprep.subr.bf16.mxu0 0
  %368 = vmatpush1.bf16.msra.mxu0 0
  %369 = vmatprep.subr.bf16.mxu0 0
  %370 = vmatpush1.bf16.msra.mxu0 0
  %371 = vmatprep.subr.bf16.mxu0 0
  %372 = vmatpush1.bf16.msra.mxu0 0
  %373 = vmatprep.subr.bf16.mxu0 0
  %374 = vmatpush1.bf16.msra.mxu0 0
  %375 = vmatprep.subr.bf16.mxu0 0
  %376 = vmatpush1.bf16.msra.mxu0 0
  %377 = vmatprep.mubr.bf16.mxu0 0
  %378 = vmatmul.mubr.bf16.gmra.mrb[0].mxu0 %v200
  %v379 = vpop.f32.mrb[0].mxu0
  %v380 = vadd.f32 %v340, %v379
  %v381 = vpop.f32.mrb[0].mxu0
  %v382 = vpop.f32.mrb[0].mxu0
  %v383 = vadd.f32 %v340, %v382
  %v384 = vpop.f32.mrb[0].mxu0
  %385 = vmatprep.mubr.bf16.mxu0 0
  %386 = vmatmul.mubr.bf16.gmra.mrb[0].mxu0 %v203
  %v387 = vpop.f32.mrb[0].mxu0
  %v388 = vadd.f32 %v340, %v387
  %v389 = vpop.f32.mrb[0].mxu0
  %v390 = vpop.f32.mrb[0].mxu0
  %v391 = vpop.f32.mrb[0].mxu0
  %392 = vdwg.mxu0
  %v393 = vmax.f32 %v380, 0.0
  %v394 = vmax.f32 %v383, 0.0
  %v395 = vmax.f32 %v388, 0.0
  %v396 = vpack.c.bf16 %v394, %v393
  %v397 = vpack.c.bf16 %v395, %v395
  %v398 = vld [vmem:[%s8] sm:$0xf]
  %v399 = vld [vmem:[%s8 + $0x4] sm:$0xf]
  %v400 = vld [vmem:[%s8 + $0x8] sm:$0xf]
  %v401 = vld [vmem:[%s8 + $0xc] sm:$0xf]
  %v406 = vunpack.c.l.b16 %v398
  %v407 = vunpack.c.l.b16 %v399
  %v408 = vunpack.c.l.b16 %v400
  %v409 = vunpack.c.l.b16 %v401
  %v410 = vpack.c.b16 %v407, %v406
  %v411 = vpack.c.b16 %v409, %v408
  %v415 = vsel %vm278, %v396, 0
  %v418 = vsel %vm278, %v397, 0
  %420 = vmatprep.subr.bf16.mxu0 0
  %421 = vmatpush1.bf16.msra.mxu0 %v410
  %422 = vmatprep.subr.bf16.mxu0 0
  %423 = vmatpush1.bf16.msra.mxu0 %v411
  %424 = vmatprep.subr.bf16.mxu0 0
  %425 = vmatpush1.bf16.msra.mxu0 0
  %426 = vmatprep.subr.bf16.mxu0 0
  %427 = vmatpush1.bf16.msra.mxu0 0
  %428 = vmatprep.subr.bf16.mxu0 0
  %429 = vmatpush1.bf16.msra.mxu0 0
  %430 = vmatprep.subr.bf16.mxu0 0
  %431 = vmatpush1.bf16.msra.mxu0 0
  %432 = vmatprep.subr.bf16.mxu0 0
  %433 = vmatpush1.bf16.msra.mxu0 0
  %434 = vmatprep.subr.bf16.mxu0 0
  %435 = vmatpush1.bf16.msra.mxu0 0
  %436 = vmatprep.subr.bf16.mxu0 0
  %437 = vmatpush1.bf16.msra.mxu0 0
  %438 = vmatprep.subr.bf16.mxu0 0
  %439 = vmatpush1.bf16.msra.mxu0 0
  %440 = vmatprep.subr.bf16.mxu0 0
  %441 = vmatpush1.bf16.msra.mxu0 0
  %442 = vmatprep.subr.bf16.mxu0 0
  %443 = vmatpush1.bf16.msra.mxu0 0
  %444 = vmatprep.subr.bf16.mxu0 0
  %445 = vmatpush1.bf16.msra.mxu0 0
  %446 = vmatprep.subr.bf16.mxu0 0
  %447 = vmatpush1.bf16.msra.mxu0 0
  %448 = vmatprep.subr.bf16.mxu0 0
  %449 = vmatpush1.bf16.msra.mxu0 0
  %450 = vmatprep.subr.bf16.mxu0 0
  %451 = vmatpush1.bf16.msra.mxu0 0
  %452 = vmatprep.mubr.bf16.mxu0 0
  %453 = vmatmul.mubr.bf16.gmra.mrb[0].mxu0 %v415
  %v454 = vpop.f32.mrb[0].mxu0
  %v455 = vadd.f32 0.0, %v454
  %v456 = vpop.f32.mrb[0].mxu0
  %v457 = vpop.f32.mrb[0].mxu0
  %v458 = vadd.f32 0.0, %v457
  %v459 = vpop.f32.mrb[0].mxu0
  %460 = vmatprep.mubr.bf16.mxu0 0
  %461 = vmatmul.mubr.bf16.gmra.mrb[0].mxu0 %v418
  %v462 = vpop.f32.mrb[0].mxu0
  %v463 = vadd.f32 0.0, %v462
  %v464 = vpop.f32.mrb[0].mxu0
  %v465 = vpop.f32.mrb[0].mxu0
  %v466 = vpop.f32.mrb[0].mxu0
  %467 = vdwg.mxu0
  %v468 = vpack.c.bf16 %v458, %v455
  %v469 = vpack.c.bf16 %v463, %v463
  %v470 = vld [vmem:[%s9] sm:$0x1]
  %v472 = vlaneseq
  %v473 = vshrl.u32 %v472, 7
  %v474 = vsub.s32 0, %v473
  %v475 = vrot.slane %v470, %v474
  %v478 = vsel %vm205, %v469, 0
  %480 = vmatprep.subr.bf16.mxu0 0
  %481 = vmatpush1.bf16.msra.mxu0 %v468
  %482 = vmatprep.subr.bf16.mxu0 0
  %483 = vmatpush1.bf16.msra.mxu0 %v478
  %484 = vmatprep.subr.bf16.mxu0 0
  %485 = vmatpush1.bf16.msra.mxu0 0
  %486 = vmatprep.subr.bf16.mxu0 0
  %487 = vmatpush1.bf16.msra.mxu0 0
  %488 = vmatprep.subr.bf16.mxu0 0
  %489 = vmatpush1.bf16.msra.mxu0 0
  %490 = vmatprep.subr.bf16.mxu0 0
  %491 = vmatpush1.bf16.msra.mxu0 0
  %492 = vmatprep.subr.bf16.mxu0 0
  %493 = vmatpush1.bf16.msra.mxu0 0
  %494 = vmatprep.subr.bf16.mxu0 0
  %495 = vmatpush1.bf16.msra.mxu0 0
  %496 = vmatprep.subr.bf16.mxu0 0
  %497 = vmatpush1.bf16.msra.mxu0 0
  %498 = vmatprep.subr.bf16.mxu0 0
  %499 = vmatpush1.bf16.msra.mxu0 0
  %500 = vmatprep.subr.bf16.mxu0 0
  %501 = vmatpush1.bf16.msra.mxu0 0
  %502 = vmatprep.subr.bf16.mxu0 0
  %503 = vmatpush1.bf16.msra.mxu0 0
  %504 = vmatprep.subr.bf16.mxu0 0
  %505 = vmatpush1.bf16.msra.mxu0 0
  %506 = vmatprep.subr.bf16.mxu0 0
  %507 = vmatpush1.bf16.msra.mxu0 0
  %508 = vmatprep.subr.bf16.mxu0 0
  %509 = vmatpush1.bf16.msra.mxu0 0
  %510 = vmatprep.subr.bf16.mxu0 0
  %511 = vmatpush1.bf16.msra.mxu0 0
  %512 = vmatprep.mubr.bf16.mxu0 0
  %513 = vmatmul.mubr.bf16.gmra.mrb[0].mxu0 %v200
  %v514 = vpop.f32.mrb[0].mxu0
  %v515 = vadd.f32 %v475, %v514
  %v516 = vpop.f32.mrb[0].mxu0
  %v517 = vpop.f32.mrb[0].mxu0
  %v518 = vadd.f32 %v475, %v517
  %v519 = vpop.f32.mrb[0].mxu0
  %520 = vmatprep.mubr.bf16.mxu0 0
  %521 = vmatmul.mubr.bf16.gmra.mrb[0].mxu0 %v203
  %v522 = vpop.f32.mrb[0].mxu0
  %v523 = vadd.f32 %v475, %v522
  %v524 = vpop.f32.mrb[0].mxu0
  %v525 = vpop.f32.mrb[0].mxu0
  %v526 = vpop.f32.mrb[0].mxu0
  %527 = vdwg.mxu0
  %v528 = vmax.f32 %v515, 0.0
  %v529 = vmax.f32 %v518, 0.0
  %v530 = vmax.f32 %v523, 0.0
  %v531 = vpack.c.bf16 %v529, %v528
  %v532 = vpack.c.bf16 %v530, %v530
  %v533 = vld [vmem:[%s10] sm:$0xf]
  %v534 = vld [vmem:[%s10 + $0x4] sm:$0xf]
  %v535 = vld [vmem:[%s10 + $0x8] sm:$0xf]
  %v536 = vld [vmem:[%s10 + $0xc] sm:$0xf]
  %v541 = vunpack.c.l.b16 %v533
  %v542 = vunpack.c.l.b16 %v534
  %v543 = vunpack.c.l.b16 %v535
  %v544 = vunpack.c.l.b16 %v536
  %v545 = vpack.c.b16 %v542, %v541
  %v546 = vpack.c.b16 %v544, %v543
  %v550 = vsel %vm278, %v531, 0
  %v553 = vsel %vm278, %v532, 0
  %555 = vmatprep.subr.bf16.mxu0 0
  %556 = vmatpush1.bf16.msra.mxu0 %v545
  %557 = vmatprep.subr.bf16.mxu0 0
  %558 = vmatpush1.bf16.msra.mxu0 %v546
  %559 = vmatprep.subr.bf16.mxu0 0
  %560 = vmatpush1.bf16.msra.mxu0 0
  %561 = vmatprep.subr.bf16.mxu0 0
  %562 = vmatpush1.bf16.msra.mxu0 0
  %563 = vmatprep.subr.bf16.mxu0 0
  %564 = vmatpush1.bf16.msra.mxu0 0
  %565 = vmatprep.subr.bf16.mxu0 0
  %566 = vmatpush1.bf16.msra.mxu0 0
  %567 = vmatprep.subr.bf16.mxu0 0
  %568 = vmatpush1.bf16.msra.mxu0 0
  %569 = vmatprep.subr.bf16.mxu0 0
  %570 = vmatpush1.bf16.msra.mxu0 0
  %571 = vmatprep.subr.bf16.mxu0 0
  %572 = vmatpush1.bf16.msra.mxu0 0
  %573 = vmatprep.subr.bf16.mxu0 0
  %574 = vmatpush1.bf16.msra.mxu0 0
  %575 = vmatprep.subr.bf16.mxu0 0
  %576 = vmatpush1.bf16.msra.mxu0 0
  %577 = vmatprep.subr.bf16.mxu0 0
  %578 = vmatpush1.bf16.msra.mxu0 0
  %579 = vmatprep.subr.bf16.mxu0 0
  %580 = vmatpush1.bf16.msra.mxu0 0
  %581 = vmatprep.subr.bf16.mxu0 0
  %582 = vmatpush1.bf16.msra.mxu0 0
  %583 = vmatprep.subr.bf16.mxu0 0
  %584 = vmatpush1.bf16.msra.mxu0 0
  %585 = vmatprep.subr.bf16.mxu0 0
  %586 = vmatpush1.bf16.msra.mxu0 0
  %587 = vmatprep.mubr.bf16.mxu0 0
  %588 = vmatmul.mubr.bf16.gmra.mrb[0].mxu0 %v550
  %v589 = vpop.f32.mrb[0].mxu0
  %v590 = vadd.f32 0.0, %v589
  %v591 = vpop.f32.mrb[0].mxu0
  %v592 = vpop.f32.mrb[0].mxu0
  %v593 = vadd.f32 0.0, %v592
  %v594 = vpop.f32.mrb[0].mxu0
  %595 = vmatprep.mubr.bf16.mxu0 0
  %596 = vmatmul.mubr.bf16.gmra.mrb[0].mxu0 %v553
  %v597 = vpop.f32.mrb[0].mxu0
  %v598 = vadd.f32 0.0, %v597
  %v599 = vpop.f32.mrb[0].mxu0
  %v600 = vpop.f32.mrb[0].mxu0
  %v601 = vpop.f32.mrb[0].mxu0
  %602 = vdwg.mxu0
  %v603 = vpack.c.bf16 %v593, %v590
  %v604 = vpack.c.bf16 %v598, %v598
  %v605 = vld [vmem:[%s11] sm:$0x1]
  %v607 = vlaneseq
  %v608 = vshrl.u32 %v607, 7
  %v609 = vsub.s32 0, %v608
  %v610 = vrot.slane %v605, %v609
  %v613 = vsel %vm205, %v604, 0
  %615 = vmatprep.subr.bf16.mxu0 0
  %616 = vmatpush1.bf16.msra.mxu0 %v603
  %617 = vmatprep.subr.bf16.mxu0 0
  %618 = vmatpush1.bf16.msra.mxu0 %v613
  %619 = vmatprep.subr.bf16.mxu0 0
  %620 = vmatpush1.bf16.msra.mxu0 0
  %621 = vmatprep.subr.bf16.mxu0 0
  %622 = vmatpush1.bf16.msra.mxu0 0
  %623 = vmatprep.subr.bf16.mxu0 0
  %624 = vmatpush1.bf16.msra.mxu0 0
  %625 = vmatprep.subr.bf16.mxu0 0
  %626 = vmatpush1.bf16.msra.mxu0 0
  %627 = vmatprep.subr.bf16.mxu0 0
  %628 = vmatpush1.bf16.msra.mxu0 0
  %629 = vmatprep.subr.bf16.mxu0 0
  %630 = vmatpush1.bf16.msra.mxu0 0
  %631 = vmatprep.subr.bf16.mxu0 0
  %632 = vmatpush1.bf16.msra.mxu0 0
  %633 = vmatprep.subr.bf16.mxu0 0
  %634 = vmatpush1.bf16.msra.mxu0 0
  %635 = vmatprep.subr.bf16.mxu0 0
  %636 = vmatpush1.bf16.msra.mxu0 0
  %637 = vmatprep.subr.bf16.mxu0 0
  %638 = vmatpush1.bf16.msra.mxu0 0
  %639 = vmatprep.subr.bf16.mxu0 0
  %640 = vmatpush1.bf16.msra.mxu0 0
  %641 = vmatprep.subr.bf16.mxu0 0
  %642 = vmatpush1.bf16.msra.mxu0 0
  %643 = vmatprep.subr.bf16.mxu0 0
  %644 = vmatpush1.bf16.msra.mxu0 0
  %645 = vmatprep.subr.bf16.mxu0 0
  %646 = vmatpush1.bf16.msra.mxu0 0
  %647 = vmatprep.mubr.bf16.mxu0 0
  %648 = vmatmul.mubr.bf16.gmra.mrb[0].mxu0 %v200
  %v649 = vpop.f32.mrb[0].mxu0
  %v650 = vadd.f32 %v610, %v649
  %v651 = vpop.f32.mrb[0].mxu0
  %v652 = vpop.f32.mrb[0].mxu0
  %v653 = vadd.f32 %v610, %v652
  %v654 = vpop.f32.mrb[0].mxu0
  %655 = vmatprep.mubr.bf16.mxu0 0
  %656 = vmatmul.mubr.bf16.gmra.mrb[0].mxu0 %v203
  %v657 = vpop.f32.mrb[0].mxu0
  %v658 = vadd.f32 %v610, %v657
  %v659 = vpop.f32.mrb[0].mxu0
  %v660 = vpop.f32.mrb[0].mxu0
  %v661 = vpop.f32.mrb[0].mxu0
  %662 = vdwg.mxu0
  %v663 = vpack.c.bf16 %v653, %v650
  %v664 = vpack.c.bf16 %v658, %v658
  %v667 = vunpack.c.l.b16 %v663
  %v668 = vunpack.c.h.b16 %v663
  %v669 = vunpack.c.l.b16 %v664
  %v670 = vpack.c.b16 %v667, %v667
  %v671 = vpack.c.b16 %v668, %v668
  %v672 = vpack.c.b16 %v669, %v669
  %vm676 = vcmask 257024
  %677 = vst.msk [vmem:[%s13] sm:$0xf] %vm676, %v670
  %678 = vst.msk [vmem:[%s13 + $0x4] sm:$0xf] %vm676, %v671
  %679 = vst.msk [vmem:[%s13 + $0x8] sm:$0xf] %vm676, %v672
  %v680 = vld [vmem:[%s12] sm:$0xf]
  %v681 = vld [vmem:[%s12 + $0x4] sm:$0xf]
  %v682 = vld [vmem:[%s12 + $0x8] sm:$0xf]
  %v683 = vld [vmem:[%s12 + $0xc] sm:$0xf]
  %v688 = vunpack.c.l.b16 %v680
  %v689 = vunpack.c.l.b16 %v681
  %v690 = vunpack.c.l.b16 %v682
  %v691 = vunpack.c.l.b16 %v683
  %v692 = vpack.c.b16 %v689, %v688
  %v693 = vpack.c.b16 %v691, %v690
  %v697 = vsel %vm278, %v663, 0
  %v700 = vsel %vm278, %v664, 0
  %702 = vmatprep.subr.bf16.mxu0 0
  %703 = vmatpush1.bf16.msra.mxu0 %v692
  %704 = vmatprep.subr.bf16.mxu0 0
  %705 = vmatpush1.bf16.msra.mxu0 %v693
  %706 = vmatprep.subr.bf16.mxu0 0
  %707 = vmatpush1.bf16.msra.mxu0 0
  %708 = vmatprep.subr.bf16.mxu0 0
  %709 = vmatpush1.bf16.msra.mxu0 0
  %710 = vmatprep.subr.bf16.mxu0 0
  %711 = vmatpush1.bf16.msra.mxu0 0
  %712 = vmatprep.subr.bf16.mxu0 0
  %713 = vmatpush1.bf16.msra.mxu0 0
  %714 = vmatprep.subr.bf16.mxu0 0
  %715 = vmatpush1.bf16.msra.mxu0 0
  %716 = vmatprep.subr.bf16.mxu0 0
  %717 = vmatpush1.bf16.msra.mxu0 0
  %718 = vmatprep.subr.bf16.mxu0 0
  %719 = vmatpush1.bf16.msra.mxu0 0
  %720 = vmatprep.subr.bf16.mxu0 0
  %721 = vmatpush1.bf16.msra.mxu0 0
  %722 = vmatprep.subr.bf16.mxu0 0
  %723 = vmatpush1.bf16.msra.mxu0 0
  %724 = vmatprep.subr.bf16.mxu0 0
  %725 = vmatpush1.bf16.msra.mxu0 0
  %726 = vmatprep.subr.bf16.mxu0 0
  %727 = vmatpush1.bf16.msra.mxu0 0
  %728 = vmatprep.subr.bf16.mxu0 0
  %729 = vmatpush1.bf16.msra.mxu0 0
  %730 = vmatprep.subr.bf16.mxu0 0
  %731 = vmatpush1.bf16.msra.mxu0 0
  %732 = vmatprep.subr.bf16.mxu0 0
  %733 = vmatpush1.bf16.msra.mxu0 0
  %734 = vmatprep.mubr.bf16.mxu0 0
  %735 = vmatmul.mubr.bf16.gmra.mrb[0].mxu0 %v697
  %v736 = vpop.f32.mrb[0].mxu0
  %v737 = vadd.f32 0.0, %v736
  %v738 = vpop.f32.mrb[0].mxu0
  %v739 = vpop.f32.mrb[0].mxu0
  %v740 = vadd.f32 0.0, %v739
  %v741 = vpop.f32.mrb[0].mxu0
  %742 = vmatprep.mubr.bf16.mxu0 0
  %743 = vmatmul.mubr.bf16.gmra.mrb[0].mxu0 %v700
  %v744 = vpop.f32.mrb[0].mxu0
  %v745 = vadd.f32 0.0, %v744
  %v746 = vpop.f32.mrb[0].mxu0
  %v747 = vpop.f32.mrb[0].mxu0
  %v748 = vpop.f32.mrb[0].mxu0
  %749 = vdwg.mxu0
  %750 = vst.msk [vmem:[%s14] sm:$0xff] %vm278, %v737
  %751 = vst.msk [vmem:[%s14 + $0x8] sm:$0xff] %vm278, %v740
  %752 = vst.msk [vmem:[%s14 + $0x10] sm:$0xff] %vm278, %v745
  // Predicated region
  $region54: #{forward_model.3} parent=0 // pred_check
    _
  $region55: #{forward_model.3} parent=0 // pred_check_branch
    %754 = sbr.rel (0) target = $region57
  $region56: #{forward_model.3} parent=0 // pred_region
    _
  $region57: #{forward_model.3} parent=0 // pred_fallthru
    _
  // Predicated region
  $region58: #{forward_model.3} parent=0 // pred_check
    _
  $region59: #{forward_model.3} parent=0 // pred_check_branch
    %756 = sbr.rel (0) target = $region61
  $region60: #{forward_model.3} parent=0 // pred_region
    _
  $region61: #{forward_model.3} parent=0 // pred_fallthru
    _
  // Predicated region
  $region62: #{forward_model.3} parent=0 // pred_check
    _
  $region63: #{forward_model.3} parent=0 // pred_check_branch
    %758 = sbr.rel (0) target = $region65
  $region64: #{forward_model.3} parent=0 // pred_region
    _
  $region65: #{forward_model.3} parent=0 // pred_fallthru
    _
  // Predicated region
  $region66: #{forward_model.3} parent=0 // pred_check
    _
  $region67: #{forward_model.3} parent=0 // pred_check_branch
    %760 = sbr.rel (0) target = $region69
  $region68: #{forward_model.3} parent=0 // pred_region
    _
  $region69: #{forward_model.3} parent=0 // pred_fallthru
    _

// kernel: forward_model.5
$region0: #{forward_model.5}
  #allocation0 [shape = 'u32[]', space=smem, size = 0x4, offset = 0x4, fixed_abs, tag = 'smem constant byte address 0x4 - core index']
  #allocation1 [shape = 'u32[144,128]{1,0:T(1,128)}', space=vmem, size = 0x12000, scoped, tag = 'internal scratch']
  #allocation2 [shape = 'f32[1,1]{1,0:T(1,128)S(1)}', space=vmem, size = 0x200, scoped, tag = 'scoped memory for forward_model.5']
  #allocation3 [shape = 'f32[1,1]{1,0:T(1,128)S(1)}', space=vmem, size = 0x200, scoped, tag = 'scoped memory for forward_model.5']
  %s0 = inlined_call_operand.vmem [shape: f32[24,32], index: 0, kind: input, shape index: {}]
  %s1 = inlined_call_operand.vmem [shape: f32[2,1,32], index: 1, kind: input, shape index: {}]
  %s2 = inlined_call_operand.vmem [shape: bf16[24,32], index: 2, kind: input, shape index: {}]
  %s3 = inlined_call_operand.vmem [shape: f32[2,32], index: 3, kind: input, shape index: {}]
  %s4 = inlined_call_operand.vmem [shape: f32[1,1,32], index: 4, kind: input, shape index: {}]
  %s5 = inlined_call_operand.vmem [shape: f32[1,1,32], index: 5, kind: input, shape index: {}]
  %s6 = inlined_call_operand.<no memory space> [shape: f32[1,1], index: 6, kind: input, shape index: {}]
  %s7 = inlined_call_operand.vmem [shape: bf16[32,32], index: 7, kind: input, shape index: {}]
  %s8 = inlined_call_operand.vmem [shape: f32[1,32], index: 8, kind: input, shape index: {}]
  %s9 = inlined_call_operand.vmem [shape: bf16[32,32], index: 9, kind: input, shape index: {}]
  %s10 = inlined_call_operand.vmem [shape: f32[1,32], index: 10, kind: input, shape index: {}]
  %s11 = inlined_call_operand.vmem [shape: bf16[32,32], index: 11, kind: input, shape index: {}]
  %s12 = inlined_call_operand.vmem [shape: f32[1,32], index: 12, kind: input, shape index: {}]
  %s13 = inlined_call_operand.vmem [shape: bf16[32,32], index: 13, kind: input, shape index: {}]
  %s14 = inlined_call_operand.vmem [shape: f32[1,32], index: 14, kind: input, shape index: {}]
  %s15 = inlined_call_operand.vmem [shape: bf16[32,32], index: 15, kind: input, shape index: {}]
  %s16 = inlined_call_operand.vmem [shape: bf16[32,32], index: 16, kind: input, shape index: {}]
  %s17 = inlined_call_operand.vmem [shape: f32[1,32], index: 17, kind: input, shape index: {}]
  %s18 = inlined_call_operand.vmem [shape: bf16[32,32], index: 18, kind: input, shape index: {}]
  %s19 = inlined_call_operand.vmem [shape: f32[1,32], index: 19, kind: input, shape index: {}]
  %s20 = inlined_call_operand.vmem [shape: bf16[32,1], index: 20, kind: input, shape index: {}]
  %s21 = inlined_call_operand.<no memory space> [shape: f32[1,1], index: 21, kind: input, shape index: {}]
  %s22 = inlined_call_operand.vmem [shape: f32[2,24], index: 22, kind: output, shape index: {0}]
  %s23 = inlined_call_operand.vmem [shape: f32[2,1], index: 23, kind: output, shape index: {1}]
  %24 = xla_tuple %s22, %s23
  %s25 = sld [smem:[#allocation0]]
  $region106: #{forward_model.5} parent=0
    _
  %s27 = ssub.s32 1, %s25
  %s28 = scalar_select 0, %s27, %s25
  %v29 = vstv %s6
  %30 = vst [vmem:[#allocation2] sm:$0x1] %v29
  %v31 = vstv %s21
  %32 = vst [vmem:[#allocation3] sm:$0x1] %v31
  // Predicated region
  $region2: #{forward_model.5} parent=0 // pred_check
    _
  $region3: #{forward_model.5} parent=0 // pred_check_branch
    %34 = sbr.rel (0) target = $region5
  $region4: #{forward_model.5} parent=0 // pred_region
    _
  $region5: #{forward_model.5} parent=0 // pred_fallthru
    _
  // Predicated region
  $region6: #{forward_model.5} parent=0 // pred_check
    _
  $region7: #{forward_model.5} parent=0 // pred_check_branch
    %36 = sbr.rel (0) target = $region9
  $region8: #{forward_model.5} parent=0 // pred_region
    _
  $region9: #{forward_model.5} parent=0 // pred_fallthru
    _
  // Predicated region
  $region10: #{forward_model.5} parent=0 // pred_check
    _
  $region11: #{forward_model.5} parent=0 // pred_check_branch
    %38 = sbr.rel (0) target = $region13
  $region12: #{forward_model.5} parent=0 // pred_region
    _
  $region13: #{forward_model.5} parent=0 // pred_fallthru
    _
  // Predicated region
  $region14: #{forward_model.5} parent=0 // pred_check
    _
  $region15: #{forward_model.5} parent=0 // pred_check_branch
    %40 = sbr.rel (0) target = $region17
  $region16: #{forward_model.5} parent=0 // pred_region
    _
  $region17: #{forward_model.5} parent=0 // pred_fallthru
    _
  // Predicated region
  $region18: #{forward_model.5} parent=0 // pred_check
    _
  $region19: #{forward_model.5} parent=0 // pred_check_branch
    %42 = sbr.rel (0) target = $region21
  $region20: #{forward_model.5} parent=0 // pred_region
    _
  $region21: #{forward_model.5} parent=0 // pred_fallthru
    _
  // Predicated region
  $region22: #{forward_model.5} parent=0 // pred_check
    _
  $region23: #{forward_model.5} parent=0 // pred_check_branch
    %44 = sbr.rel (0) target = $region25
  $region24: #{forward_model.5} parent=0 // pred_region
    _
  $region25: #{forward_model.5} parent=0 // pred_fallthru
    _
  // Predicated region
  $region26: #{forward_model.5} parent=0 // pred_check
    _
  $region27: #{forward_model.5} parent=0 // pred_check_branch
    %46 = sbr.rel (0) target = $region29
  $region28: #{forward_model.5} parent=0 // pred_region
    _
  $region29: #{forward_model.5} parent=0 // pred_fallthru
    _
  // Predicated region
  $region30: #{forward_model.5} parent=0 // pred_check
    _
  $region31: #{forward_model.5} parent=0 // pred_check_branch
    %48 = sbr.rel (0) target = $region33
  $region32: #{forward_model.5} parent=0 // pred_region
    _
  $region33: #{forward_model.5} parent=0 // pred_fallthru
    _
  // Predicated region
  $region34: #{forward_model.5} parent=0 // pred_check
    _
  $region35: #{forward_model.5} parent=0 // pred_check_branch
    %50 = sbr.rel (0) target = $region37
  $region36: #{forward_model.5} parent=0 // pred_region
    _
  $region37: #{forward_model.5} parent=0 // pred_fallthru
    _
  // Predicated region
  $region38: #{forward_model.5} parent=0 // pred_check
    _
  $region39: #{forward_model.5} parent=0 // pred_check_branch
    %52 = sbr.rel (0) target = $region41
  $region40: #{forward_model.5} parent=0 // pred_region
    _
  $region41: #{forward_model.5} parent=0 // pred_fallthru
    _
  // Predicated region
  $region42: #{forward_model.5} parent=0 // pred_check
    _
  $region43: #{forward_model.5} parent=0 // pred_check_branch
    %54 = sbr.rel (0) target = $region45
  $region44: #{forward_model.5} parent=0 // pred_region
    _
  $region45: #{forward_model.5} parent=0 // pred_fallthru
    _
  // Predicated region
  $region46: #{forward_model.5} parent=0 // pred_check
    _
  $region47: #{forward_model.5} parent=0 // pred_check_branch
    %56 = sbr.rel (0) target = $region49
  $region48: #{forward_model.5} parent=0 // pred_region
    _
  $region49: #{forward_model.5} parent=0 // pred_fallthru
    _
  // Predicated region
  $region50: #{forward_model.5} parent=0 // pred_check
    _
  $region51: #{forward_model.5} parent=0 // pred_check_branch
    %58 = sbr.rel (0) target = $region53
  $region52: #{forward_model.5} parent=0 // pred_region
    _
  $region53: #{forward_model.5} parent=0 // pred_fallthru
    _
  // Predicated region
  $region54: #{forward_model.5} parent=0 // pred_check
    _
  $region55: #{forward_model.5} parent=0 // pred_check_branch
    %60 = sbr.rel (0) target = $region57
  $region56: #{forward_model.5} parent=0 // pred_region
    _
  $region57: #{forward_model.5} parent=0 // pred_fallthru
    _
  // Predicated region
  $region58: #{forward_model.5} parent=0 // pred_check
    _
  $region59: #{forward_model.5} parent=0 // pred_check_branch
    %62 = sbr.rel (0) target = $region61
  $region60: #{forward_model.5} parent=0 // pred_region
    _
  $region61: #{forward_model.5} parent=0 // pred_fallthru
    _
  // Predicated region
  $region62: #{forward_model.5} parent=0 // pred_check
    _
  $region63: #{forward_model.5} parent=0 // pred_check_branch
    %64 = sbr.rel (0) target = $region65
  $region64: #{forward_model.5} parent=0 // pred_region
    _
  $region65: #{forward_model.5} parent=0 // pred_fallthru
    _
  // Predicated region
  $region66: #{forward_model.5} parent=0 // pred_check
    _
  $region67: #{forward_model.5} parent=0 // pred_check_branch
    %66 = sbr.rel (0) target = $region69
  $region68: #{forward_model.5} parent=0 // pred_region
    _
  $region69: #{forward_model.5} parent=0 // pred_fallthru
    _
  // Predicated region
  $region70: #{forward_model.5} parent=0 // pred_check
    _
  $region71: #{forward_model.5} parent=0 // pred_check_branch
    %68 = sbr.rel (0) target = $region73
  $region72: #{forward_model.5} parent=0 // pred_region
    _
  $region73: #{forward_model.5} parent=0 // pred_fallthru
    _
  // Predicated region
  $region74: #{forward_model.5} parent=0 // pred_check
    _
  $region75: #{forward_model.5} parent=0 // pred_check_branch
    %70 = sbr.rel (0) target = $region77
  $region76: #{forward_model.5} parent=0 // pred_region
    _
  $region77: #{forward_model.5} parent=0 // pred_fallthru
    _
  // Predicated region
  $region78: #{forward_model.5} parent=0 // pred_check
    _
  $region79: #{forward_model.5} parent=0 // pred_check_branch
    %72 = sbr.rel (0) target = $region81
  $region80: #{forward_model.5} parent=0 // pred_region
    _
  $region81: #{forward_model.5} parent=0 // pred_fallthru
    _
  // Predicated region
  $region82: #{forward_model.5} parent=0 // pred_check
    _
  $region83: #{forward_model.5} parent=0 // pred_check_branch
    %74 = sbr.rel (0) target = $region85
  $region84: #{forward_model.5} parent=0 // pred_region
    _
  $region85: #{forward_model.5} parent=0 // pred_fallthru
    _
  // Predicated region
  $region86: #{forward_model.5} parent=0 // pred_check
    _
  $region87: #{forward_model.5} parent=0 // pred_check_branch
    %76 = sbr.rel (0) target = $region89
  $region88: #{forward_model.5} parent=0 // pred_region
    _
  $region89: #{forward_model.5} parent=0 // pred_fallthru
    _
  %v78 = vld [vmem:[%s0] sm:$0xff]
  %v79 = vld [vmem:[%s0 + $0x8] sm:$0xff]
  %v80 = vld [vmem:[%s0 + $0x10] sm:$0xff]
  %v81 = vld [vmem:[%s1] sm:$0x1]
  %v82 = vld [vmem:[%s1 + $0x1] sm:$0x1]
  %v85 = vlaneseq
  %v86 = vshrl.u32 %v85, 7
  %v87 = vsub.s32 0, %v86
  %v88 = vrot.slane %v81, %v87
  %v89 = vlaneseq
  %v90 = vshrl.u32 %v89, 7
  %v91 = vsub.s32 0, %v90
  %v92 = vrot.slane %v82, %v91
  %v95 = vadd.f32 %v78, %v88
  %v96 = vadd.f32 %v79, %v88
  %v97 = vadd.f32 %v80, %v88
  %v98 = vadd.f32 %v78, %v92
  %v99 = vadd.f32 %v79, %v92
  %v100 = vadd.f32 %v80, %v92
  %v101 = vld [vmem:[%s4] sm:$0x1]
  %v103 = vlaneseq
  %v104 = vshrl.u32 %v103, 7
  %v105 = vsub.s32 0, %v104
  %v106 = vrot.slane %v101, %v105
  %v108 = vadd.f32 %v95, %v106
  %v109 = vadd.f32 %v96, %v106
  %v110 = vadd.f32 %v97, %v106
  %v111 = vadd.f32 %v98, %v106
  %v112 = vadd.f32 %v99, %v106
  %v113 = vadd.f32 %v100, %v106
  %v114 = vmax.f32 %v108, 0.0
  %v115 = vmax.f32 %v109, 0.0
  %v116 = vmax.f32 %v110, 0.0
  %v117 = vmax.f32 %v111, 0.0
  %v118 = vmax.f32 %v112, 0.0
  %v119 = vmax.f32 %v113, 0.0
  %v120 = vld [vmem:[%s5] sm:$0x1]
  %v122 = vlaneseq
  %v123 = vshrl.u32 %v122, 7
  %v124 = vsub.s32 0, %v123
  %v125 = vrot.slane %v120, %v124
  %v127 = vmul.f32 %v114, %v125
  %v128 = vmul.f32 %v115, %v125
  %v129 = vmul.f32 %v116, %v125
  %v130 = vmul.f32 %v117, %v125
  %v131 = vmul.f32 %v118, %v125
  %v132 = vmul.f32 %v119, %v125
  %vm133 = vcmask 261120
  %v134 = vsel %vm133, %v127, 0.0
  %135 = vadd.xlane.f32.xlu0 %v134
  %v136 = vpop.xlane.xlu0 %135
  %v137 = vsel %vm133, %v128, 0.0
  %138 = vadd.xlane.f32.xlu0 %v137
  %v139 = vpop.xlane.xlu0 %138
  %v140 = vsel %vm133, %v129, 0.0
  %141 = vadd.xlane.f32.xlu0 %v140
  %v142 = vpop.xlane.xlu0 %141
  %v143 = vsel %vm133, %v130, 0.0
  %144 = vadd.xlane.f32.xlu0 %v143
  %v145 = vpop.xlane.xlu0 %144
  %v146 = vsel %vm133, %v131, 0.0
  %147 = vadd.xlane.f32.xlu0 %v146
  %v148 = vpop.xlane.xlu0 %147
  %v149 = vsel %vm133, %v132, 0.0
  %150 = vadd.xlane.f32.xlu0 %v149
  %v151 = vpop.xlane.xlu0 %150
  %v152 = vld [vmem:[#allocation2] sm:$0x1]
  %v154 = vlaneseq
  %v155 = vshrl.u32 %v154, 7
  %v156 = vsub.s32 0, %v155
  %v157 = vrot.slane %v152, %v156
  %158 = vset.pattern.permute.xlu0 0
  %159 = vperm.xlu0 %158, %v157
  %v160 = vpop.permute.xlu0 %159
  %v162 = vadd.f32 %v136, %v160
  %v163 = vadd.f32 %v139, %v160
  %v164 = vadd.f32 %v142, %v160
  %v165 = vadd.f32 %v145, %v160
  %v166 = vadd.f32 %v148, %v160
  %v167 = vadd.f32 %v151, %v160
  %v168 = vsub.f32 0.0, %v162
  %v169 = vsub.f32 0.0, %v163
  %v170 = vsub.f32 0.0, %v164
  %v171 = vsub.f32 0.0, %v165
  %v172 = vsub.f32 0.0, %v166
  %v173 = vsub.f32 0.0, %v167
  %v174 = vmul.f32 %v168, 1.442695
  %v175 = vpow.pop %v174
  %v176 = vmul.f32 %v169, 1.442695
  %v177 = vpow.pop %v176
  %v178 = vmul.f32 %v170, 1.442695
  %v179 = vpow.pop %v178
  %v180 = vmul.f32 %v171, 1.442695
  %v181 = vpow.pop %v180
  %v182 = vmul.f32 %v172, 1.442695
  %v183 = vpow.pop %v182
  %v184 = vmul.f32 %v173, 1.442695
  %v185 = vpow.pop %v184
  %v186 = vadd.f32 %v175, 1.0
  %v187 = vadd.f32 %v177, 1.0
  %v188 = vadd.f32 %v179, 1.0
  %v189 = vadd.f32 %v181, 1.0
  %v190 = vadd.f32 %v183, 1.0
  %v191 = vadd.f32 %v185, 1.0
  %v192 = vrcp.pop %v186
  %v193 = vmul.f32 1.0, %v192
  %v194 = vrcp.pop %v187
  %v195 = vmul.f32 1.0, %v194
  %v196 = vrcp.pop %v188
  %v197 = vmul.f32 1.0, %v196
  %v198 = vrcp.pop %v189
  %v199 = vmul.f32 1.0, %v198
  %v200 = vrcp.pop %v190
  %v201 = vmul.f32 1.0, %v200
  %v202 = vrcp.pop %v191
  %v203 = vmul.f32 1.0, %v202
  %v210 = vlaneseq
  %v211 = vand.u32 %v210, 127
  %v212 = vlaneseq
  %v213 = vshrl.u32 %v212, 7
  %v214 = vsub.s32 %v211, %v213
  %v215 = vrot.slane %v193, %v214
  %v216 = vadd.s32 %v211, 4294967288
  %v217 = vlaneseq
  %v218 = vshrl.u32 %v217, 7
  %v219 = vsub.s32 %v216, %v218
  %v220 = vrot.slane %v195, %v219
  %vm221 = vcmask 130112
  %v222 = vsel %vm221, %v220, %v215
  %v223 = vadd.s32 %v211, 4294967280
  %v224 = vlaneseq
  %v225 = vshrl.u32 %v224, 7
  %v226 = vsub.s32 %v223, %v225
  %v227 = vrot.slane %v197, %v226
  %vm228 = vcmask 195712
  %v229 = vsel %vm228, %v227, %v222
  %v230 = vlaneseq
  %v231 = vshrl.u32 %v230, 7
  %v232 = vsub.s32 %v211, %v231
  %v233 = vrot.slane %v199, %v232
  %v234 = vlaneseq
  %v235 = vshrl.u32 %v234, 7
  %v236 = vsub.s32 %v216, %v235
  %v237 = vrot.slane %v201, %v236
  %v238 = vsel %vm221, %v237, %v233
  %v239 = vlaneseq
  %v240 = vshrl.u32 %v239, 7
  %v241 = vsub.s32 %v223, %v240
  %v242 = vrot.slane %v203, %v241
  %v243 = vsel %vm228, %v242, %v238
  %vm244 = vcmask 1041409
  %v245 = vsel %vm244, %v243, %v229
  %vm247 = vcmask 189440
  %248 = vst.msk [vmem:[%s22] sm:$0x3] %vm247, %v245
  %v249 = vpack.c.bf16 %v195, %v193
  %v250 = vpack.c.bf16 %v197, %v197
  %v251 = vpack.c.bf16 %v201, %v199
  %v252 = vpack.c.bf16 %v203, %v203
  %v253 = vld [vmem:[%s2] sm:$0xf]
  %v254 = vld [vmem:[%s2 + $0x4] sm:$0xf]
  %v255 = vld [vmem:[%s2 + $0x8] sm:$0xf]
  %v260 = vunpack.c.l.b16 %v249
  %v261 = vunpack.c.h.b16 %v249
  %v262 = vunpack.c.l.b16 %v250
  %v263 = vunpack.c.l.b16 %v251
  %v264 = vunpack.c.h.b16 %v251
  %v265 = vunpack.c.l.b16 %v252
  %v266 = vlaneseq
  %v267 = vshrl.u32 %v266, 7
  %v268 = vsub.s32 %v211, %v267
  %v269 = vrot.slane %v260, %v268
  %v270 = vlaneseq
  %v271 = vshrl.u32 %v270, 7
  %v272 = vsub.s32 %v216, %v271
  %v273 = vrot.slane %v261, %v272
  %v274 = vsel %vm221, %v273, %v269
  %v275 = vlaneseq
  %v276 = vshrl.u32 %v275, 7
  %v277 = vsub.s32 %v223, %v276
  %v278 = vrot.slane %v262, %v277
  %v279 = vsel %vm228, %v278, %v274
  %v280 = vlaneseq
  %v281 = vshrl.u32 %v280, 7
  %v282 = vsub.s32 %v211, %v281
  %v283 = vrot.slane %v263, %v282
  %v284 = vlaneseq
  %v285 = vshrl.u32 %v284, 7
  %v286 = vsub.s32 %v216, %v285
  %v287 = vrot.slane %v264, %v286
  %v288 = vsel %vm221, %v287, %v283
  %v289 = vlaneseq
  %v290 = vshrl.u32 %v289, 7
  %v291 = vsub.s32 %v223, %v290
  %v292 = vrot.slane %v265, %v291
  %v293 = vsel %vm228, %v292, %v288
  %v294 = vsel %vm244, %v293, %v279
  %v295 = vpack.c.b16 %v294, %v294
  %v299 = vunpack.c.l.b16 %v253
  %v300 = vunpack.c.l.b16 %v254
  %v301 = vunpack.c.l.b16 %v255
  %v302 = vpack.c.b16 %v300, %v299
  %v303 = vpack.c.b16 %v301, %v301
  %vm305 = vcmask 195584
  %v307 = vsel %vm305, %v295, 0
  %vm309 = vcmask 1043456
  %v311 = vsel %vm309, %v303, 0
  %313 = vmatprep.subr.bf16.mxu0 0
  %314 = vmatpush1.bf16.msra.mxu0 %v302
  %315 = vmatprep.subr.bf16.mxu0 0
  %316 = vmatpush1.bf16.msra.mxu0 %v311
  %317 = vmatprep.subr.bf16.mxu0 0
  %318 = vmatpush1.bf16.msra.mxu0 0
  %319 = vmatprep.subr.bf16.mxu0 0
  %320 = vmatpush1.bf16.msra.mxu0 0
  %321 = vmatprep.subr.bf16.mxu0 0
  %322 = vmatpush1.bf16.msra.mxu0 0
  %323 = vmatprep.subr.bf16.mxu0 0
  %324 = vmatpush1.bf16.msra.mxu0 0
  %325 = vmatprep.subr.bf16.mxu0 0
  %326 = vmatpush1.bf16.msra.mxu0 0
  %327 = vmatprep.subr.bf16.mxu0 0
  %328 = vmatpush1.bf16.msra.mxu0 0
  %329 = vmatprep.subr.bf16.mxu0 0
  %330 = vmatpush1.bf16.msra.mxu0 0
  %331 = vmatprep.subr.bf16.mxu0 0
  %332 = vmatpush1.bf16.msra.mxu0 0
  %333 = vmatprep.subr.bf16.mxu0 0
  %334 = vmatpush1.bf16.msra.mxu0 0
  %335 = vmatprep.subr.bf16.mxu0 0
  %336 = vmatpush1.bf16.msra.mxu0 0
  %337 = vmatprep.subr.bf16.mxu0 0
  %338 = vmatpush1.bf16.msra.mxu0 0
  %339 = vmatprep.subr.bf16.mxu0 0
  %340 = vmatpush1.bf16.msra.mxu0 0
  %341 = vmatprep.subr.bf16.mxu0 0
  %342 = vmatpush1.bf16.msra.mxu0 0
  %343 = vmatprep.subr.bf16.mxu0 0
  %344 = vmatpush1.bf16.msra.mxu0 0
  %345 = vmatprep.mubr.bf16.mxu0 0
  %346 = vmatmul.mubr.bf16.gmra.mrb[0].mxu0 %v307
  %v347 = vpop.f32.mrb[0].mxu0
  %v348 = vadd.f32 0.0, %v347
  %v349 = vpop.f32.mrb[0].mxu0
  %v350 = vpop.f32.mrb[0].mxu0
  %v351 = vpop.f32.mrb[0].mxu0
  %352 = vdwg.mxu0
  %v353 = vmul.f32 %v348, 0.041666668
  %v354 = vpack.c.bf16 %v353, %v353
  %v355 = vld [vmem:[%s7] sm:$0xf]
  %v356 = vld [vmem:[%s7 + $0x4] sm:$0xf]
  %v357 = vld [vmem:[%s7 + $0x8] sm:$0xf]
  %v358 = vld [vmem:[%s7 + $0xc] sm:$0xf]
  %v359 = vld [vmem:[%s8] sm:$0x1]
  %v361 = vlaneseq
  %v362 = vshrl.u32 %v361, 7
  %v363 = vsub.s32 0, %v362
  %v364 = vrot.slane %v359, %v363
  %v370 = vunpack.c.l.b16 %v355
  %v371 = vunpack.c.l.b16 %v356
  %v372 = vunpack.c.l.b16 %v357
  %v373 = vunpack.c.l.b16 %v358
  %v374 = vpack.c.b16 %v371, %v370
  %v375 = vpack.c.b16 %v373, %v372
  %v379 = vsel %vm133, %v354, 0
  %381 = vmatprep.subr.bf16.mxu0 0
  %382 = vmatpush1.bf16.msra.mxu0 %v374
  %383 = vmatprep.subr.bf16.mxu0 0
  %384 = vmatpush1.bf16.msra.mxu0 %v375
  %385 = vmatprep.subr.bf16.mxu0 0
  %386 = vmatpush1.bf16.msra.mxu0 0
  %387 = vmatprep.subr.bf16.mxu0 0
  %388 = vmatpush1.bf16.msra.mxu0 0
  %389 = vmatprep.subr.bf16.mxu0 0
  %390 = vmatpush1.bf16.msra.mxu0 0
  %391 = vmatprep.subr.bf16.mxu0 0
  %392 = vmatpush1.bf16.msra.mxu0 0
  %393 = vmatprep.subr.bf16.mxu0 0
  %394 = vmatpush1.bf16.msra.mxu0 0
  %395 = vmatprep.subr.bf16.mxu0 0
  %396 = vmatpush1.bf16.msra.mxu0 0
  %397 = vmatprep.subr.bf16.mxu0 0
  %398 = vmatpush1.bf16.msra.mxu0 0
  %399 = vmatprep.subr.bf16.mxu0 0
  %400 = vmatpush1.bf16.msra.mxu0 0
  %401 = vmatprep.subr.bf16.mxu0 0
  %402 = vmatpush1.bf16.msra.mxu0 0
  %403 = vmatprep.subr.bf16.mxu0 0
  %404 = vmatpush1.bf16.msra.mxu0 0
  %405 = vmatprep.subr.bf16.mxu0 0
  %406 = vmatpush1.bf16.msra.mxu0 0
  %407 = vmatprep.subr.bf16.mxu0 0
  %408 = vmatpush1.bf16.msra.mxu0 0
  %409 = vmatprep.subr.bf16.mxu0 0
  %410 = vmatpush1.bf16.msra.mxu0 0
  %411 = vmatprep.subr.bf16.mxu0 0
  %412 = vmatpush1.bf16.msra.mxu0 0
  %413 = vmatprep.mubr.bf16.mxu0 0
  %414 = vmatmul.mubr.bf16.gmra.mrb[0].mxu0 %v379
  %v415 = vpop.f32.mrb[0].mxu0
  %v416 = vadd.f32 %v364, %v415
  %v417 = vpop.f32.mrb[0].mxu0
  %v418 = vpop.f32.mrb[0].mxu0
  %v419 = vpop.f32.mrb[0].mxu0
  %420 = vdwg.mxu0
  %v421 = vmax.f32 %v416, 0.0
  %v422 = vpack.c.bf16 %v421, %v421
  %v423 = vld [vmem:[%s9] sm:$0xf]
  %v424 = vld [vmem:[%s9 + $0x4] sm:$0xf]
  %v425 = vld [vmem:[%s9 + $0x8] sm:$0xf]
  %v426 = vld [vmem:[%s9 + $0xc] sm:$0xf]
  %v427 = vld [vmem:[%s10] sm:$0x1]
  %v429 = vlaneseq
  %v430 = vshrl.u32 %v429, 7
  %v431 = vsub.s32 0, %v430
  %v432 = vrot.slane %v427, %v431
  %v438 = vunpack.c.l.b16 %v423
  %v439 = vunpack.c.l.b16 %v424
  %v440 = vunpack.c.l.b16 %v425
  %v441 = vunpack.c.l.b16 %v426
  %v442 = vpack.c.b16 %v439, %v438
  %v443 = vpack.c.b16 %v441, %v440
  %v447 = vsel %vm133, %v422, 0
  %449 = vmatprep.subr.bf16.mxu0 0
  %450 = vmatpush1.bf16.msra.mxu0 %v442
  %451 = vmatprep.subr.bf16.mxu0 0
  %452 = vmatpush1.bf16.msra.mxu0 %v443
  %453 = vmatprep.subr.bf16.mxu0 0
  %454 = vmatpush1.bf16.msra.mxu0 0
  %455 = vmatprep.subr.bf16.mxu0 0
  %456 = vmatpush1.bf16.msra.mxu0 0
  %457 = vmatprep.subr.bf16.mxu0 0
  %458 = vmatpush1.bf16.msra.mxu0 0
  %459 = vmatprep.subr.bf16.mxu0 0
  %460 = vmatpush1.bf16.msra.mxu0 0
  %461 = vmatprep.subr.bf16.mxu0 0
  %462 = vmatpush1.bf16.msra.mxu0 0
  %463 = vmatprep.subr.bf16.mxu0 0
  %464 = vmatpush1.bf16.msra.mxu0 0
  %465 = vmatprep.subr.bf16.mxu0 0
  %466 = vmatpush1.bf16.msra.mxu0 0
  %467 = vmatprep.subr.bf16.mxu0 0
  %468 = vmatpush1.bf16.msra.mxu0 0
  %469 = vmatprep.subr.bf16.mxu0 0
  %470 = vmatpush1.bf16.msra.mxu0 0
  %471 = vmatprep.subr.bf16.mxu0 0
  %472 = vmatpush1.bf16.msra.mxu0 0
  %473 = vmatprep.subr.bf16.mxu0 0
  %474 = vmatpush1.bf16.msra.mxu0 0
  %475 = vmatprep.subr.bf16.mxu0 0
  %476 = vmatpush1.bf16.msra.mxu0 0
  %477 = vmatprep.subr.bf16.mxu0 0
  %478 = vmatpush1.bf16.msra.mxu0 0
  %479 = vmatprep.subr.bf16.mxu0 0
  %480 = vmatpush1.bf16.msra.mxu0 0
  %481 = vmatprep.mubr.bf16.mxu0 0
  %482 = vmatmul.mubr.bf16.gmra.mrb[0].mxu0 %v447
  %v483 = vpop.f32.mrb[0].mxu0
  %v484 = vadd.f32 %v432, %v483
  %v485 = vpop.f32.mrb[0].mxu0
  %v486 = vpop.f32.mrb[0].mxu0
  %v487 = vpop.f32.mrb[0].mxu0
  %488 = vdwg.mxu0
  %v489 = vld [vmem:[%s3] sm:$0x3]
  %v490 = vpack.c.bf16 %v489, %v489
  %v491 = vld [vmem:[%s11] sm:$0xf]
  %v492 = vld [vmem:[%s11 + $0x4] sm:$0xf]
  %v493 = vld [vmem:[%s11 + $0x8] sm:$0xf]
  %v494 = vld [vmem:[%s11 + $0xc] sm:$0xf]
  %v495 = vld [vmem:[%s12] sm:$0x1]
  %v497 = vlaneseq
  %v498 = vshrl.u32 %v497, 7
  %v499 = vsub.s32 0, %v498
  %v500 = vrot.slane %v495, %v499
  %v506 = vunpack.c.l.b16 %v491
  %v507 = vunpack.c.l.b16 %v492
  %v508 = vunpack.c.l.b16 %v493
  %v509 = vunpack.c.l.b16 %v494
  %v510 = vpack.c.b16 %v507, %v506
  %v511 = vpack.c.b16 %v509, %v508
  %v515 = vsel %vm133, %v490, 0
  %517 = vmatprep.subr.bf16.mxu0 0
  %518 = vmatpush1.bf16.msra.mxu0 %v510
  %519 = vmatprep.subr.bf16.mxu0 0
  %520 = vmatpush1.bf16.msra.mxu0 %v511
  %521 = vmatprep.subr.bf16.mxu0 0
  %522 = vmatpush1.bf16.msra.mxu0 0
  %523 = vmatprep.subr.bf16.mxu0 0
  %524 = vmatpush1.bf16.msra.mxu0 0
  %525 = vmatprep.subr.bf16.mxu0 0
  %526 = vmatpush1.bf16.msra.mxu0 0
  %527 = vmatprep.subr.bf16.mxu0 0
  %528 = vmatpush1.bf16.msra.mxu0 0
  %529 = vmatprep.subr.bf16.mxu0 0
  %530 = vmatpush1.bf16.msra.mxu0 0
  %531 = vmatprep.subr.bf16.mxu0 0
  %532 = vmatpush1.bf16.msra.mxu0 0
  %533 = vmatprep.subr.bf16.mxu0 0
  %534 = vmatpush1.bf16.msra.mxu0 0
  %535 = vmatprep.subr.bf16.mxu0 0
  %536 = vmatpush1.bf16.msra.mxu0 0
  %537 = vmatprep.subr.bf16.mxu0 0
  %538 = vmatpush1.bf16.msra.mxu0 0
  %539 = vmatprep.subr.bf16.mxu0 0
  %540 = vmatpush1.bf16.msra.mxu0 0
  %541 = vmatprep.subr.bf16.mxu0 0
  %542 = vmatpush1.bf16.msra.mxu0 0
  %543 = vmatprep.subr.bf16.mxu0 0
  %544 = vmatpush1.bf16.msra.mxu0 0
  %545 = vmatprep.subr.bf16.mxu0 0
  %546 = vmatpush1.bf16.msra.mxu0 0
  %547 = vmatprep.subr.bf16.mxu0 0
  %548 = vmatpush1.bf16.msra.mxu0 0
  %549 = vmatprep.mubr.bf16.mxu0 0
  %550 = vmatmul.mubr.bf16.gmra.mrb[0].mxu0 %v515
  %v551 = vpop.f32.mrb[0].mxu0
  %v552 = vadd.f32 %v500, %v551
  %v553 = vpop.f32.mrb[0].mxu0
  %v554 = vpop.f32.mrb[0].mxu0
  %v555 = vpop.f32.mrb[0].mxu0
  %556 = vdwg.mxu0
  %v557 = vmax.f32 %v552, 0.0
  %v558 = vpack.c.bf16 %v557, %v557
  %v559 = vld [vmem:[%s13] sm:$0xf]
  %v560 = vld [vmem:[%s13 + $0x4] sm:$0xf]
  %v561 = vld [vmem:[%s13 + $0x8] sm:$0xf]
  %v562 = vld [vmem:[%s13 + $0xc] sm:$0xf]
  %v563 = vld [vmem:[%s14] sm:$0x1]
  %v565 = vlaneseq
  %v566 = vshrl.u32 %v565, 7
  %v567 = vsub.s32 0, %v566
  %v568 = vrot.slane %v563, %v567
  %v574 = vunpack.c.l.b16 %v559
  %v575 = vunpack.c.l.b16 %v560
  %v576 = vunpack.c.l.b16 %v561
  %v577 = vunpack.c.l.b16 %v562
  %v578 = vpack.c.b16 %v575, %v574
  %v579 = vpack.c.b16 %v577, %v576
  %v583 = vsel %vm133, %v558, 0
  %585 = vmatprep.subr.bf16.mxu0 0
  %586 = vmatpush1.bf16.msra.mxu0 %v578
  %587 = vmatprep.subr.bf16.mxu0 0
  %588 = vmatpush1.bf16.msra.mxu0 %v579
  %589 = vmatprep.subr.bf16.mxu0 0
  %590 = vmatpush1.bf16.msra.mxu0 0
  %591 = vmatprep.subr.bf16.mxu0 0
  %592 = vmatpush1.bf16.msra.mxu0 0
  %593 = vmatprep.subr.bf16.mxu0 0
  %594 = vmatpush1.bf16.msra.mxu0 0
  %595 = vmatprep.subr.bf16.mxu0 0
  %596 = vmatpush1.bf16.msra.mxu0 0
  %597 = vmatprep.subr.bf16.mxu0 0
  %598 = vmatpush1.bf16.msra.mxu0 0
  %599 = vmatprep.subr.bf16.mxu0 0
  %600 = vmatpush1.bf16.msra.mxu0 0
  %601 = vmatprep.subr.bf16.mxu0 0
  %602 = vmatpush1.bf16.msra.mxu0 0
  %603 = vmatprep.subr.bf16.mxu0 0
  %604 = vmatpush1.bf16.msra.mxu0 0
  %605 = vmatprep.subr.bf16.mxu0 0
  %606 = vmatpush1.bf16.msra.mxu0 0
  %607 = vmatprep.subr.bf16.mxu0 0
  %608 = vmatpush1.bf16.msra.mxu0 0
  %609 = vmatprep.subr.bf16.mxu0 0
  %610 = vmatpush1.bf16.msra.mxu0 0
  %611 = vmatprep.subr.bf16.mxu0 0
  %612 = vmatpush1.bf16.msra.mxu0 0
  %613 = vmatprep.subr.bf16.mxu0 0
  %614 = vmatpush1.bf16.msra.mxu0 0
  %615 = vmatprep.subr.bf16.mxu0 0
  %616 = vmatpush1.bf16.msra.mxu0 0
  %617 = vmatprep.mubr.bf16.mxu0 0
  %618 = vmatmul.mubr.bf16.gmra.mrb[0].mxu0 %v583
  %v619 = vpop.f32.mrb[0].mxu0
  %v620 = vadd.f32 %v568, %v619
  %v621 = vpop.f32.mrb[0].mxu0
  %v622 = vpop.f32.mrb[0].mxu0
  %v623 = vpop.f32.mrb[0].mxu0
  %624 = vdwg.mxu0
  %v625 = vpack.c.bf16 %v484, %v484
  %v626 = vld [vmem:[%s15] sm:$0xf]
  %v627 = vld [vmem:[%s15 + $0x4] sm:$0xf]
  %v628 = vld [vmem:[%s15 + $0x8] sm:$0xf]
  %v629 = vld [vmem:[%s15 + $0xc] sm:$0xf]
  %v630 = vpack.c.bf16 %v620, %v620
  %v631 = vld [vmem:[%s16] sm:$0xf]
  %v632 = vld [vmem:[%s16 + $0x4] sm:$0xf]
  %v633 = vld [vmem:[%s16 + $0x8] sm:$0xf]
  %v634 = vld [vmem:[%s16 + $0xc] sm:$0xf]
  %v639 = vunpack.c.l.b16 %v631
  %v640 = vunpack.c.l.b16 %v632
  %v641 = vunpack.c.l.b16 %v633
  %v642 = vunpack.c.l.b16 %v634
  %v643 = vpack.c.b16 %v640, %v639
  %v644 = vpack.c.b16 %v642, %v641
  %v648 = vsel %vm133, %v630, 0
  %650 = vmatprep.subr.bf16.mxu0 0
  %651 = vmatpush1.bf16.msra.mxu0 %v643
  %652 = vmatprep.subr.bf16.mxu0 0
  %653 = vmatpush1.bf16.msra.mxu0 %v644
  %654 = vmatprep.subr.bf16.mxu0 0
  %655 = vmatpush1.bf16.msra.mxu0 0
  %656 = vmatprep.subr.bf16.mxu0 0
  %657 = vmatpush1.bf16.msra.mxu0 0
  %658 = vmatprep.subr.bf16.mxu0 0
  %659 = vmatpush1.bf16.msra.mxu0 0
  %660 = vmatprep.subr.bf16.mxu0 0
  %661 = vmatpush1.bf16.msra.mxu0 0
  %662 = vmatprep.subr.bf16.mxu0 0
  %663 = vmatpush1.bf16.msra.mxu0 0
  %664 = vmatprep.subr.bf16.mxu0 0
  %665 = vmatpush1.bf16.msra.mxu0 0
  %666 = vmatprep.subr.bf16.mxu0 0
  %667 = vmatpush1.bf16.msra.mxu0 0
  %668 = vmatprep.subr.bf16.mxu0 0
  %669 = vmatpush1.bf16.msra.mxu0 0
  %670 = vmatprep.subr.bf16.mxu0 0
  %671 = vmatpush1.bf16.msra.mxu0 0
  %672 = vmatprep.subr.bf16.mxu0 0
  %673 = vmatpush1.bf16.msra.mxu0 0
  %674 = vmatprep.subr.bf16.mxu0 0
  %675 = vmatpush1.bf16.msra.mxu0 0
  %676 = vmatprep.subr.bf16.mxu0 0
  %677 = vmatpush1.bf16.msra.mxu0 0
  %678 = vmatprep.subr.bf16.mxu0 0
  %679 = vmatpush1.bf16.msra.mxu0 0
  %680 = vmatprep.subr.bf16.mxu0 0
  %681 = vmatpush1.bf16.msra.mxu0 0
  %682 = vmatprep.mubr.bf16.mxu0 0
  %683 = vmatmul.mubr.bf16.gmra.mrb[0].mxu0 %v648
  %v684 = vpop.f32.mrb[0].mxu0
  %v685 = vadd.f32 0.0, %v684
  %v686 = vpop.f32.mrb[0].mxu0
  %v687 = vpop.f32.mrb[0].mxu0
  %v688 = vpop.f32.mrb[0].mxu0
  %689 = vdwg.mxu0
  %v694 = vunpack.c.l.b16 %v626
  %v695 = vunpack.c.l.b16 %v627
  %v696 = vunpack.c.l.b16 %v628
  %v697 = vunpack.c.l.b16 %v629
  %v698 = vpack.c.b16 %v695, %v694
  %v699 = vpack.c.b16 %v697, %v696
  %v703 = vsel %vm133, %v625, 0
  %705 = vmatprep.subr.bf16.mxu0 0
  %706 = vmatpush1.bf16.msra.mxu0 %v698
  %707 = vmatprep.subr.bf16.mxu0 0
  %708 = vmatpush1.bf16.msra.mxu0 %v699
  %709 = vmatprep.subr.bf16.mxu0 0
  %710 = vmatpush1.bf16.msra.mxu0 0
  %711 = vmatprep.subr.bf16.mxu0 0
  %712 = vmatpush1.bf16.msra.mxu0 0
  %713 = vmatprep.subr.bf16.mxu0 0
  %714 = vmatpush1.bf16.msra.mxu0 0
  %715 = vmatprep.subr.bf16.mxu0 0
  %716 = vmatpush1.bf16.msra.mxu0 0
  %717 = vmatprep.subr.bf16.mxu0 0
  %718 = vmatpush1.bf16.msra.mxu0 0
  %719 = vmatprep.subr.bf16.mxu0 0
  %720 = vmatpush1.bf16.msra.mxu0 0
  %721 = vmatprep.subr.bf16.mxu0 0
  %722 = vmatpush1.bf16.msra.mxu0 0
  %723 = vmatprep.subr.bf16.mxu0 0
  %724 = vmatpush1.bf16.msra.mxu0 0
  %725 = vmatprep.subr.bf16.mxu0 0
  %726 = vmatpush1.bf16.msra.mxu0 0
  %727 = vmatprep.subr.bf16.mxu0 0
  %728 = vmatpush1.bf16.msra.mxu0 0
  %729 = vmatprep.subr.bf16.mxu0 0
  %730 = vmatpush1.bf16.msra.mxu0 0
  %731 = vmatprep.subr.bf16.mxu0 0
  %732 = vmatpush1.bf16.msra.mxu0 0
  %733 = vmatprep.subr.bf16.mxu0 0
  %734 = vmatpush1.bf16.msra.mxu0 0
  %735 = vmatprep.subr.bf16.mxu0 0
  %736 = vmatpush1.bf16.msra.mxu0 0
  %737 = vmatprep.mubr.bf16.mxu0 0
  %738 = vmatmul.mubr.bf16.gmra.mrb[0].mxu0 %v703
  %v739 = vpop.f32.mrb[0].mxu0
  %v740 = vadd.f32 %v685, %v739
  %v741 = vpop.f32.mrb[0].mxu0
  %v742 = vpop.f32.mrb[0].mxu0
  %v743 = vpop.f32.mrb[0].mxu0
  %744 = vdwg.mxu0
  %v745 = vld [vmem:[%s17] sm:$0x1]
  %v747 = vlaneseq
  %v748 = vshrl.u32 %v747, 7
  %v749 = vsub.s32 0, %v748
  %v750 = vrot.slane %v745, %v749
  %v752 = vadd.f32 %v740, %v750
  %v753 = vmax.f32 %v752, 0.0
  %v754 = vpack.c.bf16 %v753, %v753
  %v755 = vld [vmem:[%s18] sm:$0xf]
  %v756 = vld [vmem:[%s18 + $0x4] sm:$0xf]
  %v757 = vld [vmem:[%s18 + $0x8] sm:$0xf]
  %v758 = vld [vmem:[%s18 + $0xc] sm:$0xf]
  %v759 = vld [vmem:[%s19] sm:$0x1]
  %v761 = vlaneseq
  %v762 = vshrl.u32 %v761, 7
  %v763 = vsub.s32 0, %v762
  %v764 = vrot.slane %v759, %v763
  %v770 = vunpack.c.l.b16 %v755
  %v771 = vunpack.c.l.b16 %v756
  %v772 = vunpack.c.l.b16 %v757
  %v773 = vunpack.c.l.b16 %v758
  %v774 = vpack.c.b16 %v771, %v770
  %v775 = vpack.c.b16 %v773, %v772
  %v779 = vsel %vm133, %v754, 0
  %781 = vmatprep.subr.bf16.mxu0 0
  %782 = vmatpush1.bf16.msra.mxu0 %v774
  %783 = vmatprep.subr.bf16.mxu0 0
  %784 = vmatpush1.bf16.msra.mxu0 %v775
  %785 = vmatprep.subr.bf16.mxu0 0
  %786 = vmatpush1.bf16.msra.mxu0 0
  %787 = vmatprep.subr.bf16.mxu0 0
  %788 = vmatpush1.bf16.msra.mxu0 0
  %789 = vmatprep.subr.bf16.mxu0 0
  %790 = vmatpush1.bf16.msra.mxu0 0
  %791 = vmatprep.subr.bf16.mxu0 0
  %792 = vmatpush1.bf16.msra.mxu0 0
  %793 = vmatprep.subr.bf16.mxu0 0
  %794 = vmatpush1.bf16.msra.mxu0 0
  %795 = vmatprep.subr.bf16.mxu0 0
  %796 = vmatpush1.bf16.msra.mxu0 0
  %797 = vmatprep.subr.bf16.mxu0 0
  %798 = vmatpush1.bf16.msra.mxu0 0
  %799 = vmatprep.subr.bf16.mxu0 0
  %800 = vmatpush1.bf16.msra.mxu0 0
  %801 = vmatprep.subr.bf16.mxu0 0
  %802 = vmatpush1.bf16.msra.mxu0 0
  %803 = vmatprep.subr.bf16.mxu0 0
  %804 = vmatpush1.bf16.msra.mxu0 0
  %805 = vmatprep.subr.bf16.mxu0 0
  %806 = vmatpush1.bf16.msra.mxu0 0
  %807 = vmatprep.subr.bf16.mxu0 0
  %808 = vmatpush1.bf16.msra.mxu0 0
  %809 = vmatprep.subr.bf16.mxu0 0
  %810 = vmatpush1.bf16.msra.mxu0 0
  %811 = vmatprep.subr.bf16.mxu0 0
  %812 = vmatpush1.bf16.msra.mxu0 0
  %813 = vmatprep.mubr.bf16.mxu0 0
  %814 = vmatmul.mubr.bf16.gmra.mrb[0].mxu0 %v779
  %v815 = vpop.f32.mrb[0].mxu0
  %v816 = vadd.f32 %v764, %v815
  %v817 = vpop.f32.mrb[0].mxu0
  %v818 = vpop.f32.mrb[0].mxu0
  %v819 = vpop.f32.mrb[0].mxu0
  %820 = vdwg.mxu0
  %v821 = vmax.f32 %v816, 0.0
  %v822 = vpack.c.bf16 %v821, %v821
  %v823 = vld [vmem:[%s20] sm:$0xf]
  %v824 = vld [vmem:[%s20 + $0x4] sm:$0xf]
  %v825 = vld [vmem:[%s20 + $0x8] sm:$0xf]
  %v826 = vld [vmem:[%s20 + $0xc] sm:$0xf]
  %v827 = vld [vmem:[#allocation3] sm:$0x1]
  %v829 = vlaneseq
  %v830 = vshrl.u32 %v829, 7
  %v831 = vsub.s32 0, %v830
  %v832 = vrot.slane %v827, %v831
  %v838 = vunpack.c.l.b16 %v823
  %v839 = vunpack.c.l.b16 %v824
  %v840 = vunpack.c.l.b16 %v825
  %v841 = vunpack.c.l.b16 %v826
  %v842 = vpack.c.b16 %v839, %v838
  %v843 = vpack.c.b16 %v841, %v840
  %v847 = vsel %vm133, %v822, 0
  %849 = vmatprep.subr.bf16.mxu0 0
  %850 = vmatpush1.bf16.msra.mxu0 %v842
  %851 = vmatprep.subr.bf16.mxu0 0
  %852 = vmatpush1.bf16.msra.mxu0 %v843
  %853 = vmatprep.subr.bf16.mxu0 0
  %854 = vmatpush1.bf16.msra.mxu0 0
  %855 = vmatprep.subr.bf16.mxu0 0
  %856 = vmatpush1.bf16.msra.mxu0 0
  %857 = vmatprep.subr.bf16.mxu0 0
  %858 = vmatpush1.bf16.msra.mxu0 0
  %859 = vmatprep.subr.bf16.mxu0 0
  %860 = vmatpush1.bf16.msra.mxu0 0
  %861 = vmatprep.subr.bf16.mxu0 0
  %862 = vmatpush1.bf16.msra.mxu0 0
  %863 = vmatprep.subr.bf16.mxu0 0
  %864 = vmatpush1.bf16.msra.mxu0 0
  %865 = vmatprep.subr.bf16.mxu0 0
  %866 = vmatpush1.bf16.msra.mxu0 0
  %867 = vmatprep.subr.bf16.mxu0 0
  %868 = vmatpush1.bf16.msra.mxu0 0
  %869 = vmatprep.subr.bf16.mxu0 0
  %870 = vmatpush1.bf16.msra.mxu0 0
  %871 = vmatprep.subr.bf16.mxu0 0
  %872 = vmatpush1.bf16.msra.mxu0 0
  %873 = vmatprep.subr.bf16.mxu0 0
  %874 = vmatpush1.bf16.msra.mxu0 0
  %875 = vmatprep.subr.bf16.mxu0 0
  %876 = vmatpush1.bf16.msra.mxu0 0
  %877 = vmatprep.subr.bf16.mxu0 0
  %878 = vmatpush1.bf16.msra.mxu0 0
  %879 = vmatprep.subr.bf16.mxu0 0
  %880 = vmatpush1.bf16.msra.mxu0 0
  %881 = vmatprep.mubr.bf16.mxu0 0
  %882 = vmatmul.mubr.bf16.gmra.mrb[0].mxu0 %v847
  %v883 = vpop.f32.mrb[0].mxu0
  %v884 = vadd.f32 %v832, %v883
  %v885 = vpop.f32.mrb[0].mxu0
  %v886 = vpop.f32.mrb[0].mxu0
  %v887 = vpop.f32.mrb[0].mxu0
  %888 = vdwg.mxu0
  %vm889 = vcmask 1024
  %890 = vst.msk [vmem:[%s23] sm:$0x3] %vm889, %v884
  // Predicated region
  $region90: #{forward_model.5} parent=0 // pred_check
    _
  $region91: #{forward_model.5} parent=0 // pred_check_branch
    %892 = sbr.rel (0) target = $region93
  $region92: #{forward_model.5} parent=0 // pred_region
    _
  $region93: #{forward_model.5} parent=0 // pred_fallthru
    _
  // Predicated region
  $region94: #{forward_model.5} parent=0 // pred_check
    _
  $region95: #{forward_model.5} parent=0 // pred_check_branch
    %894 = sbr.rel (0) target = $region97
  $region96: #{forward_model.5} parent=0 // pred_region
    _
  $region97: #{forward_model.5} parent=0 // pred_fallthru
    _
  // Predicated region
  $region98: #{forward_model.5} parent=0 // pred_check
    _
  $region99: #{forward_model.5} parent=0 // pred_check_branch
    %896 = sbr.rel (0) target = $region101
  $region100: #{forward_model.5} parent=0 // pred_region
    _
  $region101: #{forward_model.5} parent=0 // pred_fallthru
    _
  // Predicated region
  $region102: #{forward_model.5} parent=0 // pred_check
    _
  $region103: #{forward_model.5} parent=0 // pred_check_branch
    %898 = sbr.rel (0) target = $region105
  $region104: #{forward_model.5} parent=0 // pred_region
    _
  $region105: #{forward_model.5} parent=0 // pred_fallthru
    _

</llo_original>
